<compile_context>
chip_gen: v5e
topology: v5e:2x2
jax: 0.10.0
libtpu: 0.0.40
codegen_flags: <defaults>
</compile_context>

<pallas_src>
import functools

import jax
import jax.numpy as jnp
from jax.experimental import pallas as pl
from jax.experimental.pallas import tpu as pltpu


def _round_up(x, m):
    return ((x + m - 1) // m) * m


def fold_weight_norm(w, g=None):
    """weight_norm(Linear, dim=None): effective W = g * w / ||w||_F (g scalar).

    g=None means 'use the raw weight' (exact only at init, where g == ||w||_F).
    For trained checkpoints pass the stored g to fold the norm host-side.
    """
    if g is None:
        return w
    return w * (g / jnp.linalg.norm(w))


def ban_kernel(v_ref, q_ref, wv_ref, bv_ref, wq_ref, bq_ref,
               hsum_ref, hbias_sum_ref, pool_ref, bn_shift_ref,
               out_ref, *, use_gram, mxu_dtype):
    """One tile of `bt` batch elements per grid step. All matmuls on-chip."""
    f32 = jnp.float32
    bt, nv, dv = v_ref.shape
    _, nq, dq = q_ref.shape
    Kp = wv_ref.shape[1]

    # FCNet: weight_norm Linear (+bias, already folded) + ReLU; dropout == identity (eval).
    # Flatten (batch_tile, seq) so the MXU M-dimension is filled (free relayout when seq % 8 == 0).
    v2 = v_ref[...].reshape(bt * nv, dv).astype(mxu_dtype)
    q2 = q_ref[...].reshape(bt * nq, dq).astype(mxu_dtype)
    v_ = jnp.maximum(
        jnp.dot(v2, wv_ref[...].astype(mxu_dtype), preferred_element_type=f32)
        + bv_ref[...], 0.0).reshape(bt, nv, Kp)                              # (bt, Nv, Kp)
    q_ = jnp.maximum(
        jnp.dot(q2, wq_ref[...].astype(mxu_dtype), preferred_element_type=f32)
        + bq_ref[...], 0.0).reshape(bt, nq, Kp)                              # (bt, Nq, Kp)

    hsum = hsum_ref[...]                              # (1, Kp) == sum_h h_mat[h], zero-padded
    vh = v_ * hsum.reshape(1, 1, Kp)                  # fold the head sum into v_

    if use_gram:
        # Gram path: pre[b,c] = sum_a hsum[a]*Gv[b,a,c]*Gq[b,a,c]; never builds the (Nv,Nq) map.
        gvh = jax.lax.dot_general(vh.astype(mxu_dtype), v_.astype(mxu_dtype),
                                  (((1,), (1,)), ((0,), (0,))),
                                  preferred_element_type=f32)                # (bt, Kp, Kp)
        gq = jax.lax.dot_general(q_.astype(mxu_dtype), q_.astype(mxu_dtype),
                                 (((1,), (1,)), ((0,), (0,))),
                                 preferred_element_type=f32)                 # (bt, Kp, Kp)
        pre = jnp.sum(gvh * gq, axis=1)                                      # (bt, Kp)
    else:
        # Dense path: one head-summed (Nv, Nq) map per batch element.
        a = jax.lax.dot_general(vh.astype(mxu_dtype), q_.astype(mxu_dtype),
                                (((2,), (2,)), ((0,), (0,))),
                                preferred_element_type=f32)                  # (bt, Nv, Nq)
        m = jax.lax.dot_general(a.astype(mxu_dtype), q_.astype(mxu_dtype),
                                (((2,), (1,)), ((0,), (0,))),
                                preferred_element_type=f32)                  # (bt, Nv, Kp)
        pre = jnp.sum(v_ * m, axis=1)                                        # (bt, Kp)

    # h_bias contribution == hbias_sum * colsum(v_) * colsum(q_) (rank-1 correction; padded
    # lanes of sv/sq are exactly zero so the fold stays exact).
    sv = jnp.sum(v_, axis=1)                                                 # (bt, Kp)
    sq = jnp.sum(q_, axis=1)                                                 # (bt, Kp)
    pre = pre + hbias_sum_ref[0] * sv * sq

    # AvgPool1d(k)*k (group sums) with the BatchNorm scale folded into pool_ref, then the BN
    # shift. Lane-dense (bt, Hp) store (Hp is a multiple of 128).
    out_ref[...] = (jnp.dot(pre, pool_ref[...], preferred_element_type=f32)
                    + bn_shift_ref[...])


def _select_b_tile(B, Nv, Nq, Dv, Dq, Kp, Hp, use_gram, b_tile):
    """Pick (bt, B_pad): fill MXU M, respect VMEM, prefer no batch padding, bt%8==0 or bt==B."""
    if b_tile is not None:
        bt = max(1, min(int(b_tile), B))
    else:
        f = 4.0
        per_b = f * ((Nv + Nq) * Kp + 2 * (Nv * Dv + Nq * Dq) + Hp)          # v_/q_ + 2x inputs
        per_b += f * (2 * Kp * Kp if use_gram else (Nv * Nq + Nv * Kp))      # attn intermediates
        budget = 20 * (1 << 20)            # conservative: safe under v7x 64 MiB / v5e scoped VMEM
        bt_vmem = max(1, int(budget // per_b))
        bt_mfill = -(-256 // max(1, min(Nv, Nq)))    # target M ~ 256 for v6e/v7x MXU fill
        bt = max(1, min(bt_vmem, bt_mfill, B))
    if bt >= B:
        # Keep >= 2 grid steps for v7x megacore when B splits into 8-aligned halves.
        if B >= 16 and (B // 2) % 8 == 0:
            return B // 2, B
        return B, B
    bt8 = max(8, (bt // 8) * 8)            # output BlockSpec: second-last dim % 8 == 0
    for cand in range(bt8, 7, -8):         # prefer a divisor of B -> no wasted padded-row compute
        if B % cand == 0:
            return cand, B
    return bt8, _round_up(B, bt8)


def _estimate_vmem_bytes(bt, Nv, Nq, Dv, Dq, Kp, Hp, use_gram):
    f = 4
    total = 2 * bt * (Nv * Dv + Nq * Dq) * f                    # double-buffered v/q blocks
    total += 2 * ((Dv + Dq + 3) * Kp + (Kp + 1) * Hp) * f       # double-buffered constant blocks
    total += bt * (Nv + Nq) * Kp * f                            # v_, q_
    total += bt * (2 * Kp * Kp if use_gram else (Nv * Nq + Nv * Kp)) * f
    total += 2 * bt * Hp * f                                    # output block
    return total


def ban_layer_forward(v, q, params, *, k, h_dim, h_out, b_tile=None,
                      mxu_dtype=jnp.float32, attn_path="auto"):
    """BANLayer.forward(v, q, softmax=False) in eval mode.

    mxu_dtype=jnp.bfloat16 is the recommended throughput setting on v6e/v7x (f32 accumulation,
    ~1e-2 relative tolerance vs the f32 reference).
    """
    B, Nv, Dv = v.shape
    _, Nq, Dq = q.shape
    K = h_dim * k
    wv, bv, wq, bq, hmat, hbias, pool_mat, bn_scale, bn_shift = params
    del h_out  # folded host-side into hsum / hbias_sum

    # --- host-side exact algebraic folding + lane padding (K, h_dim -> multiples of 128) ---
    Kp = _round_up(K, 128)
    Hp = _round_up(h_dim, 128)
    pad_k, pad_h = Kp - K, Hp - h_dim

    hsum = jnp.sum(hmat, axis=0, keepdims=True).astype(jnp.float32)          # (1, K)
    hbias_sum = jnp.sum(hbias).reshape(1).astype(jnp.float32)                # (1,) SMEM scalar
    pool_scaled = (pool_mat * bn_scale).astype(jnp.float32)                  # (K, h_dim)

    # Exact zero-padding: zero weight columns + zero bias -> padded activations are exactly 0,
    # zero pool rows/cols ignore them, padded output columns are sliced off host-side.
    wv_p = jnp.pad(wv.astype(jnp.float32), ((0, 0), (0, pad_k)))
    wq_p = jnp.pad(wq.astype(jnp.float32), ((0, 0), (0, pad_k)))
    bv_p = jnp.pad(bv.astype(jnp.float32).reshape(1, K), ((0, 0), (0, pad_k)))
    bq_p = jnp.pad(bq.astype(jnp.float32).reshape(1, K), ((0, 0), (0, pad_k)))
    hsum_p = jnp.pad(hsum, ((0, 0), (0, pad_k)))
    pool_p = jnp.pad(pool_scaled, ((0, pad_k), (0, pad_h)))
    bn_shift_p = jnp.pad(bn_shift.astype(jnp.float32).reshape(1, h_dim), ((0, 0), (0, pad_h)))

    if attn_path == "auto":
        # FLOP term + VMEM term: the dense (Nv,Nq) f32 map is the VMEM-pressure driver (v7x 64 MiB),
        # while the gram working set is only 2*Kp^2 per batch element.
        flops_dense = 2 * Nv * Nq * Kp
        flops_gram = (Nv + Nq) * Kp * Kp
        use_gram = (flops_dense > flops_gram) or (Nv * Nq > 8 * Kp * Kp)
    else:
        use_gram = (attn_path == "gram")

    bt, B_pad = _select_b_tile(B, Nv, Nq, Dv, Dq, Kp, Hp, use_gram, b_tile)
    if B_pad != B:
        v = jnp.pad(v, ((0, B_pad - B), (0, 0), (0, 0)))
        q = jnp.pad(q, ((0, B_pad - B), (0, 0), (0, 0)))

    vmem_limit = int(min(64 * (1 << 20),
                         max(32 * (1 << 20),
                             2 * _estimate_vmem_bytes(bt, Nv, Nq, Dv, Dq, Kp, Hp, use_gram))))

    kernel = functools.partial(ban_kernel, use_gram=use_gram, mxu_dtype=mxu_dtype)
    out = pl.pallas_call(
        kernel,
        out_shape=jax.ShapeDtypeStruct((B_pad, Hp), jnp.float32),
        grid=(B_pad // bt,),
        in_specs=[
            pl.BlockSpec((bt, Nv, Dv), lambda b: (b, 0, 0)),          # v tile
            pl.BlockSpec((bt, Nq, Dq), lambda b: (b, 0, 0)),          # q tile
            pl.BlockSpec((Dv, Kp), lambda b: (0, 0)),                 # Wv (zero-padded cols)
            pl.BlockSpec((1, Kp), lambda b: (0, 0)),                  # bv
            pl.BlockSpec((Dq, Kp), lambda b: (0, 0)),                 # Wq
            pl.BlockSpec((1, Kp), lambda b: (0, 0)),                  # bq
            pl.BlockSpec((1, Kp), lambda b: (0, 0)),                  # hsum (head-collapsed h_mat)
            pl.BlockSpec(memory_space=pltpu.MemorySpace.SMEM),        # hbias_sum scalar
            pl.BlockSpec((Kp, Hp), lambda b: (0, 0)),                 # pool * bn_scale (padded)
            pl.BlockSpec((1, Hp), lambda b: (0, 0)),                  # bn shift (padded)
        ],
        out_specs=pl.BlockSpec((bt, Hp), lambda b: (b, 0)),
        compiler_params=pltpu.CompilerParams(
            dimension_semantics=("parallel",),
            vmem_limit_bytes=vmem_limit),
    )(v, q, wv_p, bv_p, wq_p, bq_p, hsum_p, hbias_sum, pool_p, bn_shift_p)
    return out[:B, :h_dim]


def ban_reference(v, q, params, *, k, h_dim, h_out):
    """Pure-JAX reference mirroring the PyTorch forward (softmax=False, eval)."""
    wv, bv, wq, bq, hmat, hbias, _, bn_scale, bn_shift = params
    v_ = jax.nn.relu(jnp.einsum('bnd,dk->bnk', v, wv) + bv[None])
    q_ = jax.nn.relu(jnp.einsum('bnd,dk->bnk', q, wq) + bq[None])
    att = jnp.einsum('hk,bvk,bqk->bhvq', hmat, v_, q_) + hbias.reshape(1, h_out, 1, 1)
    B = v.shape[0]
    logits = jnp.zeros((B, h_dim * k), jnp.float32)
    for i in range(h_out):
        logits = logits + jnp.einsum('bvk,bvq,bqk->bk', v_, att[:, i], q_)
    logits = logits.reshape(B, h_dim, k).sum(-1)          # AvgPool1d(k) * k
    return logits * bn_scale + bn_shift


def ban_collapsed_reference(v, q, params, *, k, h_dim, mxu_dtype=jnp.float32):
    """Pure-JAX mirror of the kernel's collapsed algebra (used to validate the bf16 path)."""
    wv, bv, wq, bq, hmat, hbias, pool_mat, bn_scale, bn_shift = params
    f32 = jnp.float32
    v_ = jax.nn.relu(jnp.einsum('bnd,dk->bnk', v.astype(mxu_dtype), wv.astype(mxu_dtype),
                                preferred_element_type=f32) + bv[None])
    q_ = jax.nn.relu(jnp.einsum('bnd,dk->bnk', q.astype(mxu_dtype), wq.astype(mxu_dtype),
                                preferred_element_type=f32) + bq[None])
    vh = v_ * hmat.sum(0)[None, None, :]
    a = jnp.einsum('bik,bjk->bij', vh.astype(mxu_dtype), q_.astype(mxu_dtype),
                   preferred_element_type=f32)
    m = jnp.einsum('bij,bjk->bik', a.astype(mxu_dtype), q_.astype(mxu_dtype),
                   preferred_element_type=f32)
    pre = (v_ * m).sum(1) + hbias.sum() * v_.sum(1) * q_.sum(1)
    return pre @ (pool_mat * bn_scale) + bn_shift


if __name__ == "__main__":
    # Shapes consistent with BANLayer(v_dim=32, q_dim=32, h_dim=32, h_out=2, k=3).
    B, Nv, Nq = 12, 8, 8
    v_dim, q_dim, h_dim, h_out, kk = 32, 32, 32, 2, 3
    K = h_dim * kk
    eps = 1e-5

    key = jax.random.PRNGKey(0)
    ks = jax.random.split(key, 10)

    # weight_norm(Linear, dim=None): fold g*w/||w|| host-side (exact for trained checkpoints too).
    wv_raw = jax.random.normal(ks[0], (v_dim, K), jnp.float32) / jnp.sqrt(v_dim)
    wq_raw = jax.random.normal(ks[2], (q_dim, K), jnp.float32) / jnp.sqrt(q_dim)
    gv = 0.5 + jax.random.uniform(ks[8], (), jnp.float32)
    gq = 0.5 + jax.random.uniform(ks[9], (), jnp.float32)
    wv = fold_weight_norm(wv_raw, gv)
    wq = fold_weight_norm(wq_raw, gq)
    bv = jax.random.normal(ks[1], (1, K), jnp.float32) * 0.1
    bq = jax.random.normal(ks[3], (1, K), jnp.float32) * 0.1
    hmat = jax.random.normal(ks[4], (h_out, K), jnp.float32)      # h_mat.normal_()
    hbias = jax.random.normal(ks[5], (h_out, 1), jnp.float32)     # h_bias.normal_()

    # Pooling matrix for AvgPool1d(k, stride=k) * k  == group-sum.
    pool_mat = (jnp.arange(K)[:, None] // kk == jnp.arange(h_dim)[None, :]
                ).astype(jnp.float32)                             # (K, h_dim)

    # BatchNorm1d(h_dim) eval-mode params (gamma=1, beta=0, running stats 0/1).
    gamma = jnp.ones((h_dim,), jnp.float32)
    beta = jnp.zeros((h_dim,), jnp.float32)
    run_mean = jnp.zeros((h_dim,), jnp.float32)
    run_var = jnp.ones((h_dim,), jnp.float32)
    bn_scale = (gamma / jnp.sqrt(run_var + eps)).reshape(1, h_dim)
    bn_shift = (beta - run_mean * gamma / jnp.sqrt(run_var + eps)).reshape(1, h_dim)

    params = (wv, bv, wq, bq, hmat, hbias, pool_mat, bn_scale, bn_shift)

    v = jax.random.normal(ks[6], (B, Nv, v_dim), jnp.float32)
    q = jax.random.normal(ks[7], (B, Nq, q_dim), jnp.float32)

    ref = jax.block_until_ready(ban_reference(v, q, params, k=kk, h_dim=h_dim, h_out=h_out))
    ref_scale = float(jnp.max(jnp.abs(ref))) + 1.0

    # 1) Dense attention-map path, f32 MXU inputs, auto tile selection (bt=B here, no padding).
    out = jax.block_until_ready(ban_layer_forward(
        v, q, params, k=kk, h_dim=h_dim, h_out=h_out,
        mxu_dtype=jnp.float32, attn_path="dense"))
    assert out.shape == (B, h_dim), out.shape
    err = float(jnp.max(jnp.abs(out - ref)))
    assert err <= 1e-2 * ref_scale, f"dense f32 mismatch: max_err={err}"

    # 2) Gram-matrix path (long-sequence formulation; exact same math).
    out_g = jax.block_until_ready(ban_layer_forward(
        v, q, params, k=kk, h_dim=h_dim, h_out=h_out,
        mxu_dtype=jnp.float32, attn_path="gram"))
    err_g = float(jnp.max(jnp.abs(out_g - ref)))
    assert err_g <= 1e-2 * ref_scale, f"gram f32 mismatch: max_err={err_g}"

    # 3) Explicit b_tile=8 (exercises the padded-batch / multi-step-grid path).
    out_t = jax.block_until_ready(ban_layer_forward(
        v, q, params, k=kk, h_dim=h_dim, h_out=h_out, b_tile=8,
        mxu_dtype=jnp.float32, attn_path="dense"))
    err_t = float(jnp.max(jnp.abs(out_t - ref)))
    assert err_t <= 1e-2 * ref_scale, f"tiled f32 mismatch: max_err={err_t}"

    # 4) bf16 MXU inputs / f32 accumulation (recommended on v6e/v7x), validated against a
    #    pure-JAX mirror of the same bf16 computation (~1e-2 relative tolerance).
    out_bf = jax.block_until_ready(ban_layer_forward(
        v, q, params, k=kk, h_dim=h_dim, h_out=h_out,
        mxu_dtype=jnp.bfloat16, attn_path="dense"))
    ref_bf = jax.block_until_ready(ban_collapsed_reference(
        v, q, params, k=kk, h_dim=h_dim, mxu_dtype=jnp.bfloat16))
    err_bf = float(jnp.max(jnp.abs(out_bf - ref_bf)))
    assert err_bf <= 1e-2 * (float(jnp.max(jnp.abs(ref_bf))) + 1.0), \
        f"dense bf16 mismatch: max_err={err_bf}"

    print("KERNEL_OK")
</pallas_src>

<mosaic_0001>
module attributes {stable_mosaic.version = 11 : i64} {
  func.func @ban_kernel(%arg0: i32, %arg1: memref<12x8x32xf32, #tpu.memory_space<vmem>>, %arg2: memref<12x8x32xf32, #tpu.memory_space<vmem>>, %arg3: memref<32x128xf32, #tpu.memory_space<vmem>>, %arg4: memref<1x128xf32, #tpu.memory_space<vmem>>, %arg5: memref<32x128xf32, #tpu.memory_space<vmem>>, %arg6: memref<1x128xf32, #tpu.memory_space<vmem>>, %arg7: memref<1x128xf32, #tpu.memory_space<vmem>>, %arg8: memref<1xf32, #tpu.memory_space<smem>>, %arg9: memref<128x128xf32, #tpu.memory_space<vmem>>, %arg10: memref<1x128xf32, #tpu.memory_space<vmem>>, %arg11: memref<12x128xf32, #tpu.memory_space<vmem>>) attributes {dimension_semantics = [#tpu.dimension_semantics<parallel>], iteration_bounds = array<i64: 1>, scalar_prefetch = 0 : i64, scratch_operands = 0 : i64, tpu.core_type = #tpu.core_type<tc>, window_params = [{transform_indices = @transform_0, window_bounds = array<i64: 12, 8, 32>}, {transform_indices = @transform_1, window_bounds = array<i64: 12, 8, 32>}, {pipeline_mode = #tpu.pipeline_mode<synchronous>, transform_indices = @transform_2, window_bounds = array<i64: 32, 128>}, {pipeline_mode = #tpu.pipeline_mode<synchronous>, transform_indices = @transform_3, window_bounds = array<i64: 1, 128>}, {pipeline_mode = #tpu.pipeline_mode<synchronous>, transform_indices = @transform_4, window_bounds = array<i64: 32, 128>}, {pipeline_mode = #tpu.pipeline_mode<synchronous>, transform_indices = @transform_5, window_bounds = array<i64: 1, 128>}, {pipeline_mode = #tpu.pipeline_mode<synchronous>, transform_indices = @transform_6, window_bounds = array<i64: 1, 128>}, {transform_indices = @transform_7, window_bounds = array<i64: 1>}, {pipeline_mode = #tpu.pipeline_mode<synchronous>, transform_indices = @transform_8, window_bounds = array<i64: 128, 128>}, {pipeline_mode = #tpu.pipeline_mode<synchronous>, transform_indices = @transform_9, window_bounds = array<i64: 1, 128>}, {transform_indices = @transform_10, window_bounds = array<i64: 12, 128>}]} {
    %c0 = arith.constant 0 : index
    %c0_0 = arith.constant 0 : index
    %c0_1 = arith.constant 0 : index
    %0 = vector.load %arg1[%c0, %c0_0, %c0_1] : memref<12x8x32xf32, #tpu.memory_space<vmem>>, vector<12x8x32xf32>
    %1 = vector.shape_cast %0 : vector<12x8x32xf32> to vector<96x32xf32>
    %c0_2 = arith.constant 0 : index
    %c0_3 = arith.constant 0 : index
    %c0_4 = arith.constant 0 : index
    %2 = vector.load %arg2[%c0_2, %c0_3, %c0_4] : memref<12x8x32xf32, #tpu.memory_space<vmem>>, vector<12x8x32xf32>
    %3 = vector.shape_cast %2 : vector<12x8x32xf32> to vector<96x32xf32>
    %c0_5 = arith.constant 0 : index
    %c0_6 = arith.constant 0 : index
    %4 = vector.load %arg3[%c0_5, %c0_6] : memref<32x128xf32, #tpu.memory_space<vmem>>, vector<32x128xf32>
    %cst = arith.constant dense<0.000000e+00> : vector<96x128xf32>
    %5 = tpu.matmul %1, %4, %cst {dimension_numbers = #tpu.dot_dimension_numbers<[1], [0], [0], [1], [0, 0, 1, 1], [], []>} : vector<96x32xf32>, vector<32x128xf32>, vector<96x128xf32> -> vector<96x128xf32>
    %c0_7 = arith.constant 0 : index
    %c0_8 = arith.constant 0 : index
    %6 = vector.load %arg4[%c0_7, %c0_8] : memref<1x128xf32, #tpu.memory_space<vmem>>, vector<1x128xf32>
    %7 = vector.broadcast %6 : vector<1x128xf32> to vector<96x128xf32>
    %8 = arith.addf %5, %7 : vector<96x128xf32>
    %cst_9 = arith.constant 0.000000e+00 : f32
    %9 = vector.broadcast %cst_9 : f32 to vector<96x128xf32>
    %10 = arith.maximumf %8, %9 : vector<96x128xf32>
    %11 = vector.shape_cast %10 : vector<96x128xf32> to vector<12x8x128xf32>
    %c0_10 = arith.constant 0 : index
    %c0_11 = arith.constant 0 : index
    %12 = vector.load %arg5[%c0_10, %c0_11] : memref<32x128xf32, #tpu.memory_space<vmem>>, vector<32x128xf32>
    %cst_12 = arith.constant dense<0.000000e+00> : vector<96x128xf32>
    %13 = tpu.matmul %3, %12, %cst_12 {dimension_numbers = #tpu.dot_dimension_numbers<[1], [0], [0], [1], [0, 0, 1, 1], [], []>} : vector<96x32xf32>, vector<32x128xf32>, vector<96x128xf32> -> vector<96x128xf32>
    %c0_13 = arith.constant 0 : index
    %c0_14 = arith.constant 0 : index
    %14 = vector.load %arg6[%c0_13, %c0_14] : memref<1x128xf32, #tpu.memory_space<vmem>>, vector<1x128xf32>
    %15 = vector.broadcast %14 : vector<1x128xf32> to vector<96x128xf32>
    %16 = arith.addf %13, %15 : vector<96x128xf32>
    %cst_15 = arith.constant 0.000000e+00 : f32
    %17 = vector.broadcast %cst_15 : f32 to vector<96x128xf32>
    %18 = arith.maximumf %16, %17 : vector<96x128xf32>
    %19 = vector.shape_cast %18 : vector<96x128xf32> to vector<12x8x128xf32>
    %c0_16 = arith.constant 0 : index
    %c0_17 = arith.constant 0 : index
    %20 = vector.load %arg7[%c0_16, %c0_17] : memref<1x128xf32, #tpu.memory_space<vmem>>, vector<1x128xf32>
    %21 = vector.shape_cast %20 : vector<1x128xf32> to vector<1x1x128xf32>
    %22 = vector.broadcast %21 : vector<1x1x128xf32> to vector<12x8x128xf32>
    %23 = arith.mulf %11, %22 : vector<12x8x128xf32>
    %cst_18 = arith.constant dense<0.000000e+00> : vector<12x8x8xf32>
    %24 = tpu.matmul %23, %19, %cst_18 {dimension_numbers = #tpu.dot_dimension_numbers<[2], [2], [1], [1], [0, 0, 0, 1, 1, 1], [0], [0]>} : vector<12x8x128xf32>, vector<12x8x128xf32>, vector<12x8x8xf32> -> vector<12x8x8xf32>
    %cst_19 = arith.constant dense<0.000000e+00> : vector<12x8x128xf32>
    %25 = tpu.matmul %24, %19, %cst_19 {dimension_numbers = #tpu.dot_dimension_numbers<[2], [1], [1], [2], [0, 0, 0, 1, 1, 2], [0], [0]>} : vector<12x8x8xf32>, vector<12x8x128xf32>, vector<12x8x128xf32> -> vector<12x8x128xf32>
    %26 = arith.mulf %11, %25 : vector<12x8x128xf32>
    %cst_20 = arith.constant dense<0.000000e+00> : vector<12x128xf32>
    %27 = vector.multi_reduction <add>, %26, %cst_20 [1] : vector<12x8x128xf32> to vector<12x128xf32>
    %cst_21 = arith.constant dense<0.000000e+00> : vector<12x128xf32>
    %28 = vector.multi_reduction <add>, %11, %cst_21 [1] : vector<12x8x128xf32> to vector<12x128xf32>
    %cst_22 = arith.constant dense<0.000000e+00> : vector<12x128xf32>
    %29 = vector.multi_reduction <add>, %19, %cst_22 [1] : vector<12x8x128xf32> to vector<12x128xf32>
    %c0_23 = arith.constant 0 : index
    %30 = memref.load %arg8[%c0_23] : memref<1xf32, #tpu.memory_space<smem>>
    %31 = vector.broadcast %30 : f32 to vector<12x128xf32>
    %32 = arith.mulf %31, %28 : vector<12x128xf32>
    %33 = arith.mulf %32, %29 : vector<12x128xf32>
    %34 = arith.addf %27, %33 : vector<12x128xf32>
    %c0_24 = arith.constant 0 : index
    %c0_25 = arith.constant 0 : index
    %35 = vector.load %arg9[%c0_24, %c0_25] : memref<128x128xf32, #tpu.memory_space<vmem>>, vector<128x128xf32>
    %cst_26 = arith.constant dense<0.000000e+00> : vector<12x128xf32>
    %36 = tpu.matmul %34, %35, %cst_26 {dimension_numbers = #tpu.dot_dimension_numbers<[1], [0], [0], [1], [0, 0, 1, 1], [], []>} : vector<12x128xf32>, vector<128x128xf32>, vector<12x128xf32> -> vector<12x128xf32>
    %c0_27 = arith.constant 0 : index
    %c0_28 = arith.constant 0 : index
    %37 = vector.load %arg10[%c0_27, %c0_28] : memref<1x128xf32, #tpu.memory_space<vmem>>, vector<1x128xf32>
    %38 = vector.broadcast %37 : vector<1x128xf32> to vector<12x128xf32>
    %39 = arith.addf %36, %38 : vector<12x128xf32>
    %c0_29 = arith.constant 0 : index
    %c0_30 = arith.constant 0 : index
    %40 = vector.load %arg11[%c0_29, %c0_30] : memref<12x128xf32, #tpu.memory_space<vmem>>, vector<12x128xf32>
    tpu.vector_store %arg11[%c0_29, %c0_30], %39 {strides = array<i32>} : memref<12x128xf32, #tpu.memory_space<vmem>>, vector<12x128xf32>,
    return
  }
  func.func @transform_0(%arg0: i32) -> (i32, i32, i32) {
    %c0_i32 = arith.constant 0 : i32
    %c0_i32_0 = arith.constant 0 : i32
    %c0_i32_1 = arith.constant 0 : i32
    return %arg0, %c0_i32, %c0_i32_0 : i32, i32, i32
  }
  func.func @transform_1(%arg0: i32) -> (i32, i32, i32) {
    %c0_i32 = arith.constant 0 : i32
    %c0_i32_0 = arith.constant 0 : i32
    %c0_i32_1 = arith.constant 0 : i32
    return %arg0, %c0_i32, %c0_i32_0 : i32, i32, i32
  }
  func.func @transform_2(%arg0: i32) -> (i32, i32) {
    %c0_i32 = arith.constant 0 : i32
    %c0_i32_0 = arith.constant 0 : i32
    %c0_i32_1 = arith.constant 0 : i32
    return %c0_i32, %c0_i32_0 : i32, i32
  }
  func.func @transform_3(%arg0: i32) -> (i32, i32) {
    %c0_i32 = arith.constant 0 : i32
    %c0_i32_0 = arith.constant 0 : i32
    %c0_i32_1 = arith.constant 0 : i32
    return %c0_i32, %c0_i32_0 : i32, i32
  }
  func.func @transform_4(%arg0: i32) -> (i32, i32) {
    %c0_i32 = arith.constant 0 : i32
    %c0_i32_0 = arith.constant 0 : i32
    %c0_i32_1 = arith.constant 0 : i32
    return %c0_i32, %c0_i32_0 : i32, i32
  }
  func.func @transform_5(%arg0: i32) -> (i32, i32) {
    %c0_i32 = arith.constant 0 : i32
    %c0_i32_0 = arith.constant 0 : i32
    %c0_i32_1 = arith.constant 0 : i32
    return %c0_i32, %c0_i32_0 : i32, i32
  }
  func.func @transform_6(%arg0: i32) -> (i32, i32) {
    %c0_i32 = arith.constant 0 : i32
    %c0_i32_0 = arith.constant 0 : i32
    %c0_i32_1 = arith.constant 0 : i32
    return %c0_i32, %c0_i32_0 : i32, i32
  }
  func.func @transform_7(%arg0: i32) -> i32 {
    %c0_i32 = arith.constant 0 : i32
    %c0_i32_0 = arith.constant 0 : i32
    return %c0_i32 : i32
  }
  func.func @transform_8(%arg0: i32) -> (i32, i32) {
    %c0_i32 = arith.constant 0 : i32
    %c0_i32_0 = arith.constant 0 : i32
    %c0_i32_1 = arith.constant 0 : i32
    return %c0_i32, %c0_i32_0 : i32, i32
  }
  func.func @transform_9(%arg0: i32) -> (i32, i32) {
    %c0_i32 = arith.constant 0 : i32
    %c0_i32_0 = arith.constant 0 : i32
    %c0_i32_1 = arith.constant 0 : i32
    return %c0_i32, %c0_i32_0 : i32, i32
  }
  func.func @transform_10(%arg0: i32) -> (i32, i32) {
    %c0_i32 = arith.constant 0 : i32
    %c0_i32_0 = arith.constant 0 : i32
    return %arg0, %c0_i32 : i32, i32
  }
}

</mosaic_0001>

<llo_original>
// kernel: tpu_custom_call.1
$region0: #{tpu_custom_call.1}
  #allocation0 [shape = 'u32[]', space=smem, size = 0x4, offset = 0x4, fixed_abs, tag = 'smem constant byte address 0x4 - core index']
  #allocation1 [shape = 'u32[72,128]{1,0:T(1,128)}', space=vmem, size = 0x9000, scoped, tag = 'internal scratch']
  #allocation2 [shape = 'f32[1]{0:T(128)S(6)}', space=smem, size = 0x200, scoped, tag = 'scoped memory for tpu_custom_call.1']
  %s0 = inlined_call_operand.hbm [shape: f32[12,8,32], index: 0, kind: input, shape index: {}]
  %s1 = inlined_call_operand.hbm [shape: f32[12,8,32], index: 1, kind: input, shape index: {}]
  %s2 = inlined_call_operand.hbm [shape: f32[32,128], index: 2, kind: input, shape index: {}]
  %s3 = inlined_call_operand.vmem [shape: f32[1,128], index: 3, kind: input, shape index: {}]
  %s4 = inlined_call_operand.hbm [shape: f32[32,128], index: 4, kind: input, shape index: {}]
  %s5 = inlined_call_operand.vmem [shape: f32[1,128], index: 5, kind: input, shape index: {}]
  %s6 = inlined_call_operand.vmem [shape: f32[1,128], index: 6, kind: input, shape index: {}]
  %s7 = inlined_call_operand.<no memory space> [shape: f32[1], index: 7, kind: input, shape index: {}]
  %s8 = inlined_call_operand.hbm [shape: f32[128,128], index: 8, kind: input, shape index: {}]
  %s9 = inlined_call_operand.vmem [shape: f32[1,128], index: 9, kind: input, shape index: {}]
  %s10 = inlined_call_operand.hbm [shape: f32[12,128], index: 10, kind: output, shape index: {}]
  %s11 = sld [smem:[#allocation0]]
  $region70: #{tpu_custom_call.1} parent=0
    _
  %s13 = ssub.s32 1, %s11
  %s14 = scalar_select 0, %s13, %s11
  %15 = sst [smem:[#allocation2]] %s7
  $region1: #{tpu_custom_call.1} parent=0
    #allocation3 [shape = 'u8[49152]{0}', space=vmem, size = 0xc000, scoped, tag = 'input window, operand 0, single buffered']
    #allocation4 [shape = 's32[1]{0}', space=sflag, size = 0x4, scoped, tag = 'scoped memory for tpu_custom_call.1']
    #allocation5 [shape = 's32[1]{0}', space=sflag, size = 0x4, scoped, tag = 'scoped memory for tpu_custom_call.1']
    #allocation6 [shape = 'u8[49152]{0}', space=vmem, size = 0xc000, scoped, tag = 'input window, operand 1, single buffered']
    #allocation7 [shape = 's32[1]{0}', space=sflag, size = 0x4, scoped, tag = 'scoped memory for tpu_custom_call.1']
    #allocation8 [shape = 'u8[16384]{0}', space=vmem, size = 0x4000, scoped, tag = 'input window, operand 2, single buffered']
    #allocation9 [shape = 'u8[16384]{0}', space=vmem, size = 0x4000, scoped, tag = 'input window, operand 4, single buffered']
    #allocation10 [shape = 's32[1]{0}', space=sflag, size = 0x4, scoped, tag = 'scoped memory for tpu_custom_call.1']
    #allocation11 [shape = 'u8[65536]{0}', space=vmem, size = 0x10000, scoped, tag = 'input window, operand 8, single buffered']
    #allocation12 [shape = 'u8[8192]{0}', space=vmem, size = 0x2000, scoped, tag = 'output window, operand 0, single buffered']
    %16 = vsyncpa [#allocation4], 0
    %17 = vsyncpa [#allocation7], 0
    %18 = vsyncpa [#allocation10], 0
    %19 = vsyncpa [#allocation5], 0
    // Predicated region
    $region2: #{tpu_custom_call.1} parent=1 // pred_check
      _
    $region3: #{tpu_custom_call.1} parent=1 // pred_check_branch
      %21 = sbr.rel (0) target = $region5
    $region4: #{tpu_custom_call.1} parent=1 // pred_region
      %23 = vsyncadd [#allocation4], 0
      %s24 = sshll.u32 %s0, 4
      %s25 = int_to_ptr.hbm [resolvable:$true] %s24
      %s26 = sshll.u32 [#allocation3], 4
      %s27 = int_to_ptr.vmem [resolvable:$true] %s26
      %32 = dma.hbm_to_vmem [thread:$0]  %s25, 1536, %s27, [#allocation4], 128, 128, 8
    $region5: #{tpu_custom_call.1} parent=1 // pred_fallthru
      _
    // Predicated region
    $region6: #{tpu_custom_call.1} parent=1 // pred_check
      _
    $region7: #{tpu_custom_call.1} parent=1 // pred_check_branch
      %34 = sbr.rel (0) target = $region9
    $region8: #{tpu_custom_call.1} parent=1 // pred_region
      %36 = vsyncadd [#allocation7], 0
      %s37 = sshll.u32 %s1, 4
      %s38 = int_to_ptr.hbm [resolvable:$true] %s37
      %s39 = sshll.u32 [#allocation6], 4
      %s40 = int_to_ptr.vmem [resolvable:$true] %s39
      %45 = dma.hbm_to_vmem [thread:$0]  %s38, 1536, %s40, [#allocation7], 128, 128, 8
    $region9: #{tpu_custom_call.1} parent=1 // pred_fallthru
      _
    // Predicated region
    $region10: #{tpu_custom_call.1} parent=1 // pred_check
      _
    $region11: #{tpu_custom_call.1} parent=1 // pred_check_branch
      %47 = sbr.rel (0) target = $region13
    $region12: #{tpu_custom_call.1} parent=1 // pred_region
      %49 = vsyncadd [#allocation7], 0
      %s50 = sshll.u32 %s2, 4
      %s51 = int_to_ptr.hbm [resolvable:$true] %s50
      %s52 = sshll.u32 [#allocation8], 4
      %s53 = int_to_ptr.vmem [resolvable:$true] %s52
      %58 = dma.hbm_to_vmem [thread:$0]  %s51, 512, %s53, [#allocation7], 128, 128, 8
    $region13: #{tpu_custom_call.1} parent=1 // pred_fallthru
      _
    // Predicated region
    $region14: #{tpu_custom_call.1} parent=1 // pred_check
      _
    $region15: #{tpu_custom_call.1} parent=1 // pred_check_branch
      %60 = sbr.rel (0) target = $region17
    $region16: #{tpu_custom_call.1} parent=1 // pred_region
      _
    $region17: #{tpu_custom_call.1} parent=1 // pred_fallthru
      _
    // Predicated region
    $region18: #{tpu_custom_call.1} parent=1 // pred_check
      _
    $region19: #{tpu_custom_call.1} parent=1 // pred_check_branch
      %62 = sbr.rel (0) target = $region21
    $region20: #{tpu_custom_call.1} parent=1 // pred_region
      %64 = vsyncadd [#allocation10], 0
      %s65 = sshll.u32 %s4, 4
      %s66 = int_to_ptr.hbm [resolvable:$true] %s65
      %s67 = sshll.u32 [#allocation9], 4
      %s68 = int_to_ptr.vmem [resolvable:$true] %s67
      %73 = dma.hbm_to_vmem [thread:$0]  %s66, 512, %s68, [#allocation10], 128, 128, 8
    $region21: #{tpu_custom_call.1} parent=1 // pred_fallthru
      _
    // Predicated region
    $region22: #{tpu_custom_call.1} parent=1 // pred_check
      _
    $region23: #{tpu_custom_call.1} parent=1 // pred_check_branch
      %75 = sbr.rel (0) target = $region25
    $region24: #{tpu_custom_call.1} parent=1 // pred_region
      _
    $region25: #{tpu_custom_call.1} parent=1 // pred_fallthru
      _
    // Predicated region
    $region26: #{tpu_custom_call.1} parent=1 // pred_check
      _
    $region27: #{tpu_custom_call.1} parent=1 // pred_check_branch
      %77 = sbr.rel (0) target = $region29
    $region28: #{tpu_custom_call.1} parent=1 // pred_region
      _
    $region29: #{tpu_custom_call.1} parent=1 // pred_fallthru
      _
    // Predicated region
    $region30: #{tpu_custom_call.1} parent=1 // pred_check
      _
    $region31: #{tpu_custom_call.1} parent=1 // pred_check_branch
      %79 = sbr.rel (0) target = $region33
    $region32: #{tpu_custom_call.1} parent=1 // pred_region
      _
    $region33: #{tpu_custom_call.1} parent=1 // pred_fallthru
      _
    // Predicated region
    $region34: #{tpu_custom_call.1} parent=1 // pred_check
      _
    $region35: #{tpu_custom_call.1} parent=1 // pred_check_branch
      %81 = sbr.rel (0) target = $region37
    $region36: #{tpu_custom_call.1} parent=1 // pred_region
      %83 = vsyncadd [#allocation10], 0
      %s84 = sshll.u32 %s8, 4
      %s85 = int_to_ptr.hbm [resolvable:$true] %s84
      %s86 = sshll.u32 [#allocation11], 4
      %s87 = int_to_ptr.vmem [resolvable:$true] %s86
      %92 = dma.hbm_to_vmem [thread:$0]  %s85, 2048, %s87, [#allocation10], 128, 128, 8
    $region37: #{tpu_custom_call.1} parent=1 // pred_fallthru
      _
    // Predicated region
    $region38: #{tpu_custom_call.1} parent=1 // pred_check
      _
    $region39: #{tpu_custom_call.1} parent=1 // pred_check_branch
      %94 = sbr.rel (0) target = $region41
    $region40: #{tpu_custom_call.1} parent=1 // pred_region
      _
    $region41: #{tpu_custom_call.1} parent=1 // pred_fallthru
      _
    // Predicated region
    $region42: #{tpu_custom_call.1} parent=1 // pred_check
      _
    $region43: #{tpu_custom_call.1} parent=1 // pred_check_branch
      %96 = sbr.rel (0) target = $region45
    $region44: #{tpu_custom_call.1} parent=1 // pred_region
      %98 = dma.done [#allocation4], 1536
    $region45: #{tpu_custom_call.1} parent=1 // pred_fallthru
      _
    // Predicated region
    $region46: #{tpu_custom_call.1} parent=1 // pred_check
      _
    $region47: #{tpu_custom_call.1} parent=1 // pred_check_branch
      %100 = sbr.rel (0) target = $region49
    $region48: #{tpu_custom_call.1} parent=1 // pred_region
      %102 = dma.done [#allocation7], 1536
    $region49: #{tpu_custom_call.1} parent=1 // pred_fallthru
      _
    // Predicated region
    $region50: #{tpu_custom_call.1} parent=1 // pred_check
      _
    $region51: #{tpu_custom_call.1} parent=1 // pred_check_branch
      %104 = sbr.rel (0) target = $region53
    $region52: #{tpu_custom_call.1} parent=1 // pred_region
      %106 = dma.done [#allocation7], 512
    $region53: #{tpu_custom_call.1} parent=1 // pred_fallthru
      _
    // Predicated region
    $region54: #{tpu_custom_call.1} parent=1 // pred_check
      _
    $region55: #{tpu_custom_call.1} parent=1 // pred_check_branch
      %108 = sbr.rel (0) target = $region57
    $region56: #{tpu_custom_call.1} parent=1 // pred_region
      %110 = dma.done [#allocation10], 512
    $region57: #{tpu_custom_call.1} parent=1 // pred_fallthru
      _
    // Predicated region
    $region58: #{tpu_custom_call.1} parent=1 // pred_check
      _
    $region59: #{tpu_custom_call.1} parent=1 // pred_check_branch
      %112 = sbr.rel (0) target = $region61
    $region60: #{tpu_custom_call.1} parent=1 // pred_region
      %114 = dma.done [#allocation10], 2048
    $region61: #{tpu_custom_call.1} parent=1 // pred_fallthru
      _
    %v115 = vld [vmem:[#allocation3] sm:$0xff]
    %v116 = vld [vmem:[#allocation3 + $0x8] sm:$0xff]
    %v117 = vld [vmem:[#allocation3 + $0x10] sm:$0xff]
    %v118 = vld [vmem:[#allocation3 + $0x18] sm:$0xff]
    %v119 = vld [vmem:[#allocation3 + $0x20] sm:$0xff]
    %v120 = vld [vmem:[#allocation3 + $0x28] sm:$0xff]
    %v121 = vld [vmem:[#allocation3 + $0x30] sm:$0xff]
    %v122 = vld [vmem:[#allocation3 + $0x38] sm:$0xff]
    %v123 = vld [vmem:[#allocation3 + $0x40] sm:$0xff]
    %v124 = vld [vmem:[#allocation3 + $0x48] sm:$0xff]
    %v125 = vld [vmem:[#allocation3 + $0x50] sm:$0xff]
    %v126 = vld [vmem:[#allocation3 + $0x58] sm:$0xff]
    %v127 = vld [vmem:[#allocation6] sm:$0xff]
    %v128 = vld [vmem:[#allocation6 + $0x8] sm:$0xff]
    %v129 = vld [vmem:[#allocation6 + $0x10] sm:$0xff]
    %v130 = vld [vmem:[#allocation6 + $0x18] sm:$0xff]
    %v131 = vld [vmem:[#allocation6 + $0x20] sm:$0xff]
    %v132 = vld [vmem:[#allocation6 + $0x28] sm:$0xff]
    %v133 = vld [vmem:[#allocation6 + $0x30] sm:$0xff]
    %v134 = vld [vmem:[#allocation6 + $0x38] sm:$0xff]
    %v135 = vld [vmem:[#allocation6 + $0x40] sm:$0xff]
    %v136 = vld [vmem:[#allocation6 + $0x48] sm:$0xff]
    %v137 = vld [vmem:[#allocation6 + $0x50] sm:$0xff]
    %v138 = vld [vmem:[#allocation6 + $0x58] sm:$0xff]
    %v139 = vld [vmem:[#allocation8] sm:$0xff]
    %v140 = vld [vmem:[#allocation8 + $0x8] sm:$0xff]
    %v141 = vld [vmem:[#allocation8 + $0x10] sm:$0xff]
    %v142 = vld [vmem:[#allocation8 + $0x18] sm:$0xff]
    %v143 = vld [vmem:[%s3] sm:$0x1]
    %v145 = vperm.slane %v143, 0
    %vm147 = vcmask 261120
    %v149 = vsel %vm147, %v115, 0
    %v152 = vsel %vm147, %v116, 0
    %v155 = vsel %vm147, %v117, 0
    %v158 = vsel %vm147, %v118, 0
    %v161 = vsel %vm147, %v119, 0
    %v164 = vsel %vm147, %v120, 0
    %v167 = vsel %vm147, %v121, 0
    %v170 = vsel %vm147, %v122, 0
    %v173 = vsel %vm147, %v123, 0
    %v176 = vsel %vm147, %v124, 0
    %v179 = vsel %vm147, %v125, 0
    %v182 = vsel %vm147, %v126, 0
    %184 = vmatpush.msra.mxu0 0.0
    %185 = vmatpush.msra.mxu0 0.0
    %186 = vmatpush.msra.mxu0 0.0
    %187 = vmatpush.msra.mxu0 0.0
    %188 = vmatpush.msra.mxu0 0.0
    %189 = vmatpush.msra.mxu0 0.0
    %190 = vmatpush.msra.mxu0 0.0
    %191 = vmatpush.msra.mxu0 0.0
    %192 = vmatpush.msra.mxu0 0.0
    %193 = vmatpush.msra.mxu0 0.0
    %194 = vmatpush.msra.mxu0 0.0
    %195 = vmatpush.msra.mxu0 0.0
    %196 = vmatpush.msra.mxu0 %v142
    %197 = vmatpush.msra.mxu0 %v141
    %198 = vmatpush.msra.mxu0 %v140
    %199 = vmatpush.msra.mxu0 %v139
    %200 = vmatmul.f32.gmra.mxu0 %v149
    %v201 = vpop.f32.mrf.mxu0
    %v202 = vadd.f32 %v145, %v201
    %203 = vmatmul.f32.gmra.mxu0 %v152
    %v204 = vpop.f32.mrf.mxu0
    %v205 = vadd.f32 %v145, %v204
    %206 = vmatmul.f32.gmra.mxu0 %v155
    %v207 = vpop.f32.mrf.mxu0
    %v208 = vadd.f32 %v145, %v207
    %209 = vmatmul.f32.gmra.mxu0 %v158
    %v210 = vpop.f32.mrf.mxu0
    %v211 = vadd.f32 %v145, %v210
    %212 = vmatmul.f32.gmra.mxu0 %v161
    %v213 = vpop.f32.mrf.mxu0
    %v214 = vadd.f32 %v145, %v213
    %215 = vmatmul.f32.gmra.mxu0 %v164
    %v216 = vpop.f32.mrf.mxu0
    %v217 = vadd.f32 %v145, %v216
    %218 = vmatmul.f32.gmra.mxu0 %v167
    %v219 = vpop.f32.mrf.mxu0
    %v220 = vadd.f32 %v145, %v219
    %221 = vmatmul.f32.gmra.mxu0 %v170
    %v222 = vpop.f32.mrf.mxu0
    %v223 = vadd.f32 %v145, %v222
    %224 = vmatmul.f32.gmra.mxu0 %v173
    %v225 = vpop.f32.mrf.mxu0
    %v226 = vadd.f32 %v145, %v225
    %227 = vmatmul.f32.gmra.mxu0 %v176
    %v228 = vpop.f32.mrf.mxu0
    %v229 = vadd.f32 %v145, %v228
    %230 = vmatmul.f32.gmra.mxu0 %v179
    %v231 = vpop.f32.mrf.mxu0
    %v232 = vadd.f32 %v145, %v231
    %233 = vmatmul.f32.gmra.mxu0 %v182
    %v234 = vpop.f32.mrf.mxu0
    %v235 = vadd.f32 %v145, %v234
    %236 = vdwg.mxu0
    %v237 = vmax.f32 %v202, 0.0
    %v238 = vmax.f32 %v205, 0.0
    %v239 = vmax.f32 %v208, 0.0
    %v240 = vmax.f32 %v211, 0.0
    %v241 = vmax.f32 %v214, 0.0
    %v242 = vmax.f32 %v217, 0.0
    %v243 = vmax.f32 %v220, 0.0
    %v244 = vmax.f32 %v223, 0.0
    %v245 = vmax.f32 %v226, 0.0
    %v246 = vmax.f32 %v229, 0.0
    %v247 = vmax.f32 %v232, 0.0
    %v248 = vmax.f32 %v235, 0.0
    %v249 = vld [vmem:[#allocation9] sm:$0xff]
    %v250 = vld [vmem:[#allocation9 + $0x8] sm:$0xff]
    %v251 = vld [vmem:[#allocation9 + $0x10] sm:$0xff]
    %v252 = vld [vmem:[#allocation9 + $0x18] sm:$0xff]
    %v253 = vld [vmem:[%s5] sm:$0x1]
    %v255 = vperm.slane %v253, 0
    %v258 = vsel %vm147, %v127, 0
    %v261 = vsel %vm147, %v128, 0
    %v264 = vsel %vm147, %v129, 0
    %v267 = vsel %vm147, %v130, 0
    %v270 = vsel %vm147, %v131, 0
    %v273 = vsel %vm147, %v132, 0
    %v276 = vsel %vm147, %v133, 0
    %v279 = vsel %vm147, %v134, 0
    %v282 = vsel %vm147, %v135, 0
    %v285 = vsel %vm147, %v136, 0
    %v288 = vsel %vm147, %v137, 0
    %v291 = vsel %vm147, %v138, 0
    %293 = vmatpush.msra.mxu0 0.0
    %294 = vmatpush.msra.mxu0 0.0
    %295 = vmatpush.msra.mxu0 0.0
    %296 = vmatpush.msra.mxu0 0.0
    %297 = vmatpush.msra.mxu0 0.0
    %298 = vmatpush.msra.mxu0 0.0
    %299 = vmatpush.msra.mxu0 0.0
    %300 = vmatpush.msra.mxu0 0.0
    %301 = vmatpush.msra.mxu0 0.0
    %302 = vmatpush.msra.mxu0 0.0
    %303 = vmatpush.msra.mxu0 0.0
    %304 = vmatpush.msra.mxu0 0.0
    %305 = vmatpush.msra.mxu0 %v252
    %306 = vmatpush.msra.mxu0 %v251
    %307 = vmatpush.msra.mxu0 %v250
    %308 = vmatpush.msra.mxu0 %v249
    %309 = vmatmul.f32.gmra.mxu0 %v258
    %v310 = vpop.f32.mrf.mxu0
    %v311 = vadd.f32 %v255, %v310
    %312 = vmatmul.f32.gmra.mxu0 %v261
    %v313 = vpop.f32.mrf.mxu0
    %v314 = vadd.f32 %v255, %v313
    %315 = vmatmul.f32.gmra.mxu0 %v264
    %v316 = vpop.f32.mrf.mxu0
    %v317 = vadd.f32 %v255, %v316
    %318 = vmatmul.f32.gmra.mxu0 %v267
    %v319 = vpop.f32.mrf.mxu0
    %v320 = vadd.f32 %v255, %v319
    %321 = vmatmul.f32.gmra.mxu0 %v270
    %v322 = vpop.f32.mrf.mxu0
    %v323 = vadd.f32 %v255, %v322
    %324 = vmatmul.f32.gmra.mxu0 %v273
    %v325 = vpop.f32.mrf.mxu0
    %v326 = vadd.f32 %v255, %v325
    %327 = vmatmul.f32.gmra.mxu0 %v276
    %v328 = vpop.f32.mrf.mxu0
    %v329 = vadd.f32 %v255, %v328
    %330 = vmatmul.f32.gmra.mxu0 %v279
    %v331 = vpop.f32.mrf.mxu0
    %v332 = vadd.f32 %v255, %v331
    %333 = vmatmul.f32.gmra.mxu0 %v282
    %v334 = vpop.f32.mrf.mxu0
    %v335 = vadd.f32 %v255, %v334
    %336 = vmatmul.f32.gmra.mxu0 %v285
    %v337 = vpop.f32.mrf.mxu0
    %v338 = vadd.f32 %v255, %v337
    %339 = vmatmul.f32.gmra.mxu0 %v288
    %v340 = vpop.f32.mrf.mxu0
    %v341 = vadd.f32 %v255, %v340
    %342 = vmatmul.f32.gmra.mxu0 %v291
    %v343 = vpop.f32.mrf.mxu0
    %v344 = vadd.f32 %v255, %v343
    %345 = vdwg.mxu0
    %v346 = vmax.f32 %v311, 0.0
    %v347 = vmax.f32 %v314, 0.0
    %v348 = vmax.f32 %v317, 0.0
    %v349 = vmax.f32 %v320, 0.0
    %v350 = vmax.f32 %v323, 0.0
    %v351 = vmax.f32 %v326, 0.0
    %v352 = vmax.f32 %v329, 0.0
    %v353 = vmax.f32 %v332, 0.0
    %v354 = vmax.f32 %v335, 0.0
    %v355 = vmax.f32 %v338, 0.0
    %v356 = vmax.f32 %v341, 0.0
    %v357 = vmax.f32 %v344, 0.0
    %v358 = vld [vmem:[%s6] sm:$0x1]
    %v360 = vperm.slane %v358, 0
    %v362 = vmul.f32 %v237, %v360
    %v363 = vmul.f32 %v238, %v360
    %v364 = vmul.f32 %v239, %v360
    %v365 = vmul.f32 %v240, %v360
    %v366 = vmul.f32 %v241, %v360
    %v367 = vmul.f32 %v242, %v360
    %v368 = vmul.f32 %v243, %v360
    %v369 = vmul.f32 %v244, %v360
    %v370 = vmul.f32 %v245, %v360
    %v371 = vmul.f32 %v246, %v360
    %v372 = vmul.f32 %v247, %v360
    %v373 = vmul.f32 %v248, %v360
    %374 = vmatpush.xpose.msra.mxu0 0.0
    %375 = vmatpush.xpose.msra.mxu0 0.0
    %376 = vmatpush.xpose.msra.mxu0 0.0
    %377 = vmatpush.xpose.msra.mxu0 0.0
    %378 = vmatpush.xpose.msra.mxu0 0.0
    %379 = vmatpush.xpose.msra.mxu0 0.0
    %380 = vmatpush.xpose.msra.mxu0 0.0
    %381 = vmatpush.xpose.msra.mxu0 0.0
    %382 = vmatpush.xpose.msra.mxu0 0.0
    %383 = vmatpush.xpose.msra.mxu0 0.0
    %384 = vmatpush.xpose.msra.mxu0 0.0
    %385 = vmatpush.xpose.msra.mxu0 0.0
    %386 = vmatpush.xpose.msra.mxu0 0.0
    %387 = vmatpush.xpose.msra.mxu0 0.0
    %388 = vmatpush.xpose.msra.mxu0 0.0
    %389 = vmatpush.xpose.msra.mxu0 %v346
    %390 = vmatmul.f32.gmra.mxu0 %v362
    %v391 = vpop.f32.mrf.mxu0
    %v392 = vadd.f32 0.0, %v391
    %393 = vdwg.mxu0
    %394 = vmatpush.xpose.msra.mxu0 0.0
    %395 = vmatpush.xpose.msra.mxu0 0.0
    %396 = vmatpush.xpose.msra.mxu0 0.0
    %397 = vmatpush.xpose.msra.mxu0 0.0
    %398 = vmatpush.xpose.msra.mxu0 0.0
    %399 = vmatpush.xpose.msra.mxu0 0.0
    %400 = vmatpush.xpose.msra.mxu0 0.0
    %401 = vmatpush.xpose.msra.mxu0 0.0
    %402 = vmatpush.xpose.msra.mxu0 0.0
    %403 = vmatpush.xpose.msra.mxu0 0.0
    %404 = vmatpush.xpose.msra.mxu0 0.0
    %405 = vmatpush.xpose.msra.mxu0 0.0
    %406 = vmatpush.xpose.msra.mxu0 0.0
    %407 = vmatpush.xpose.msra.mxu0 0.0
    %408 = vmatpush.xpose.msra.mxu0 0.0
    %409 = vmatpush.xpose.msra.mxu0 %v347
    %410 = vmatmul.f32.gmra.mxu0 %v363
    %v411 = vpop.f32.mrf.mxu0
    %v412 = vadd.f32 0.0, %v411
    %413 = vdwg.mxu0
    %414 = vmatpush.xpose.msra.mxu0 0.0
    %415 = vmatpush.xpose.msra.mxu0 0.0
    %416 = vmatpush.xpose.msra.mxu0 0.0
    %417 = vmatpush.xpose.msra.mxu0 0.0
    %418 = vmatpush.xpose.msra.mxu0 0.0
    %419 = vmatpush.xpose.msra.mxu0 0.0
    %420 = vmatpush.xpose.msra.mxu0 0.0
    %421 = vmatpush.xpose.msra.mxu0 0.0
    %422 = vmatpush.xpose.msra.mxu0 0.0
    %423 = vmatpush.xpose.msra.mxu0 0.0
    %424 = vmatpush.xpose.msra.mxu0 0.0
    %425 = vmatpush.xpose.msra.mxu0 0.0
    %426 = vmatpush.xpose.msra.mxu0 0.0
    %427 = vmatpush.xpose.msra.mxu0 0.0
    %428 = vmatpush.xpose.msra.mxu0 0.0
    %429 = vmatpush.xpose.msra.mxu0 %v348
    %430 = vmatmul.f32.gmra.mxu0 %v364
    %v431 = vpop.f32.mrf.mxu0
    %v432 = vadd.f32 0.0, %v431
    %433 = vdwg.mxu0
    %434 = vmatpush.xpose.msra.mxu0 0.0
    %435 = vmatpush.xpose.msra.mxu0 0.0
    %436 = vmatpush.xpose.msra.mxu0 0.0
    %437 = vmatpush.xpose.msra.mxu0 0.0
    %438 = vmatpush.xpose.msra.mxu0 0.0
    %439 = vmatpush.xpose.msra.mxu0 0.0
    %440 = vmatpush.xpose.msra.mxu0 0.0
    %441 = vmatpush.xpose.msra.mxu0 0.0
    %442 = vmatpush.xpose.msra.mxu0 0.0
    %443 = vmatpush.xpose.msra.mxu0 0.0
    %444 = vmatpush.xpose.msra.mxu0 0.0
    %445 = vmatpush.xpose.msra.mxu0 0.0
    %446 = vmatpush.xpose.msra.mxu0 0.0
    %447 = vmatpush.xpose.msra.mxu0 0.0
    %448 = vmatpush.xpose.msra.mxu0 0.0
    %449 = vmatpush.xpose.msra.mxu0 %v349
    %450 = vmatmul.f32.gmra.mxu0 %v365
    %v451 = vpop.f32.mrf.mxu0
    %v452 = vadd.f32 0.0, %v451
    %453 = vdwg.mxu0
    %454 = vmatpush.xpose.msra.mxu0 0.0
    %455 = vmatpush.xpose.msra.mxu0 0.0
    %456 = vmatpush.xpose.msra.mxu0 0.0
    %457 = vmatpush.xpose.msra.mxu0 0.0
    %458 = vmatpush.xpose.msra.mxu0 0.0
    %459 = vmatpush.xpose.msra.mxu0 0.0
    %460 = vmatpush.xpose.msra.mxu0 0.0
    %461 = vmatpush.xpose.msra.mxu0 0.0
    %462 = vmatpush.xpose.msra.mxu0 0.0
    %463 = vmatpush.xpose.msra.mxu0 0.0
    %464 = vmatpush.xpose.msra.mxu0 0.0
    %465 = vmatpush.xpose.msra.mxu0 0.0
    %466 = vmatpush.xpose.msra.mxu0 0.0
    %467 = vmatpush.xpose.msra.mxu0 0.0
    %468 = vmatpush.xpose.msra.mxu0 0.0
    %469 = vmatpush.xpose.msra.mxu0 %v350
    %470 = vmatmul.f32.gmra.mxu0 %v366
    %v471 = vpop.f32.mrf.mxu0
    %v472 = vadd.f32 0.0, %v471
    %473 = vdwg.mxu0
    %474 = vmatpush.xpose.msra.mxu0 0.0
    %475 = vmatpush.xpose.msra.mxu0 0.0
    %476 = vmatpush.xpose.msra.mxu0 0.0
    %477 = vmatpush.xpose.msra.mxu0 0.0
    %478 = vmatpush.xpose.msra.mxu0 0.0
    %479 = vmatpush.xpose.msra.mxu0 0.0
    %480 = vmatpush.xpose.msra.mxu0 0.0
    %481 = vmatpush.xpose.msra.mxu0 0.0
    %482 = vmatpush.xpose.msra.mxu0 0.0
    %483 = vmatpush.xpose.msra.mxu0 0.0
    %484 = vmatpush.xpose.msra.mxu0 0.0
    %485 = vmatpush.xpose.msra.mxu0 0.0
    %486 = vmatpush.xpose.msra.mxu0 0.0
    %487 = vmatpush.xpose.msra.mxu0 0.0
    %488 = vmatpush.xpose.msra.mxu0 0.0
    %489 = vmatpush.xpose.msra.mxu0 %v351
    %490 = vmatmul.f32.gmra.mxu0 %v367
    %v491 = vpop.f32.mrf.mxu0
    %v492 = vadd.f32 0.0, %v491
    %493 = vdwg.mxu0
    %494 = vmatpush.xpose.msra.mxu0 0.0
    %495 = vmatpush.xpose.msra.mxu0 0.0
    %496 = vmatpush.xpose.msra.mxu0 0.0
    %497 = vmatpush.xpose.msra.mxu0 0.0
    %498 = vmatpush.xpose.msra.mxu0 0.0
    %499 = vmatpush.xpose.msra.mxu0 0.0
    %500 = vmatpush.xpose.msra.mxu0 0.0
    %501 = vmatpush.xpose.msra.mxu0 0.0
    %502 = vmatpush.xpose.msra.mxu0 0.0
    %503 = vmatpush.xpose.msra.mxu0 0.0
    %504 = vmatpush.xpose.msra.mxu0 0.0
    %505 = vmatpush.xpose.msra.mxu0 0.0
    %506 = vmatpush.xpose.msra.mxu0 0.0
    %507 = vmatpush.xpose.msra.mxu0 0.0
    %508 = vmatpush.xpose.msra.mxu0 0.0
    %509 = vmatpush.xpose.msra.mxu0 %v352
    %510 = vmatmul.f32.gmra.mxu0 %v368
    %v511 = vpop.f32.mrf.mxu0
    %v512 = vadd.f32 0.0, %v511
    %513 = vdwg.mxu0
    %514 = vmatpush.xpose.msra.mxu0 0.0
    %515 = vmatpush.xpose.msra.mxu0 0.0
    %516 = vmatpush.xpose.msra.mxu0 0.0
    %517 = vmatpush.xpose.msra.mxu0 0.0
    %518 = vmatpush.xpose.msra.mxu0 0.0
    %519 = vmatpush.xpose.msra.mxu0 0.0
    %520 = vmatpush.xpose.msra.mxu0 0.0
    %521 = vmatpush.xpose.msra.mxu0 0.0
    %522 = vmatpush.xpose.msra.mxu0 0.0
    %523 = vmatpush.xpose.msra.mxu0 0.0
    %524 = vmatpush.xpose.msra.mxu0 0.0
    %525 = vmatpush.xpose.msra.mxu0 0.0
    %526 = vmatpush.xpose.msra.mxu0 0.0
    %527 = vmatpush.xpose.msra.mxu0 0.0
    %528 = vmatpush.xpose.msra.mxu0 0.0
    %529 = vmatpush.xpose.msra.mxu0 %v353
    %530 = vmatmul.f32.gmra.mxu0 %v369
    %v531 = vpop.f32.mrf.mxu0
    %v532 = vadd.f32 0.0, %v531
    %533 = vdwg.mxu0
    %534 = vmatpush.xpose.msra.mxu0 0.0
    %535 = vmatpush.xpose.msra.mxu0 0.0
    %536 = vmatpush.xpose.msra.mxu0 0.0
    %537 = vmatpush.xpose.msra.mxu0 0.0
    %538 = vmatpush.xpose.msra.mxu0 0.0
    %539 = vmatpush.xpose.msra.mxu0 0.0
    %540 = vmatpush.xpose.msra.mxu0 0.0
    %541 = vmatpush.xpose.msra.mxu0 0.0
    %542 = vmatpush.xpose.msra.mxu0 0.0
    %543 = vmatpush.xpose.msra.mxu0 0.0
    %544 = vmatpush.xpose.msra.mxu0 0.0
    %545 = vmatpush.xpose.msra.mxu0 0.0
    %546 = vmatpush.xpose.msra.mxu0 0.0
    %547 = vmatpush.xpose.msra.mxu0 0.0
    %548 = vmatpush.xpose.msra.mxu0 0.0
    %549 = vmatpush.xpose.msra.mxu0 %v354
    %550 = vmatmul.f32.gmra.mxu0 %v370
    %v551 = vpop.f32.mrf.mxu0
    %v552 = vadd.f32 0.0, %v551
    %553 = vdwg.mxu0
    %554 = vmatpush.xpose.msra.mxu0 0.0
    %555 = vmatpush.xpose.msra.mxu0 0.0
    %556 = vmatpush.xpose.msra.mxu0 0.0
    %557 = vmatpush.xpose.msra.mxu0 0.0
    %558 = vmatpush.xpose.msra.mxu0 0.0
    %559 = vmatpush.xpose.msra.mxu0 0.0
    %560 = vmatpush.xpose.msra.mxu0 0.0
    %561 = vmatpush.xpose.msra.mxu0 0.0
    %562 = vmatpush.xpose.msra.mxu0 0.0
    %563 = vmatpush.xpose.msra.mxu0 0.0
    %564 = vmatpush.xpose.msra.mxu0 0.0
    %565 = vmatpush.xpose.msra.mxu0 0.0
    %566 = vmatpush.xpose.msra.mxu0 0.0
    %567 = vmatpush.xpose.msra.mxu0 0.0
    %568 = vmatpush.xpose.msra.mxu0 0.0
    %569 = vmatpush.xpose.msra.mxu0 %v355
    %570 = vmatmul.f32.gmra.mxu0 %v371
    %v571 = vpop.f32.mrf.mxu0
    %v572 = vadd.f32 0.0, %v571
    %573 = vdwg.mxu0
    %574 = vmatpush.xpose.msra.mxu0 0.0
    %575 = vmatpush.xpose.msra.mxu0 0.0
    %576 = vmatpush.xpose.msra.mxu0 0.0
    %577 = vmatpush.xpose.msra.mxu0 0.0
    %578 = vmatpush.xpose.msra.mxu0 0.0
    %579 = vmatpush.xpose.msra.mxu0 0.0
    %580 = vmatpush.xpose.msra.mxu0 0.0
    %581 = vmatpush.xpose.msra.mxu0 0.0
    %582 = vmatpush.xpose.msra.mxu0 0.0
    %583 = vmatpush.xpose.msra.mxu0 0.0
    %584 = vmatpush.xpose.msra.mxu0 0.0
    %585 = vmatpush.xpose.msra.mxu0 0.0
    %586 = vmatpush.xpose.msra.mxu0 0.0
    %587 = vmatpush.xpose.msra.mxu0 0.0
    %588 = vmatpush.xpose.msra.mxu0 0.0
    %589 = vmatpush.xpose.msra.mxu0 %v356
    %590 = vmatmul.f32.gmra.mxu0 %v372
    %v591 = vpop.f32.mrf.mxu0
    %v592 = vadd.f32 0.0, %v591
    %593 = vdwg.mxu0
    %594 = vmatpush.xpose.msra.mxu0 0.0
    %595 = vmatpush.xpose.msra.mxu0 0.0
    %596 = vmatpush.xpose.msra.mxu0 0.0
    %597 = vmatpush.xpose.msra.mxu0 0.0
    %598 = vmatpush.xpose.msra.mxu0 0.0
    %599 = vmatpush.xpose.msra.mxu0 0.0
    %600 = vmatpush.xpose.msra.mxu0 0.0
    %601 = vmatpush.xpose.msra.mxu0 0.0
    %602 = vmatpush.xpose.msra.mxu0 0.0
    %603 = vmatpush.xpose.msra.mxu0 0.0
    %604 = vmatpush.xpose.msra.mxu0 0.0
    %605 = vmatpush.xpose.msra.mxu0 0.0
    %606 = vmatpush.xpose.msra.mxu0 0.0
    %607 = vmatpush.xpose.msra.mxu0 0.0
    %608 = vmatpush.xpose.msra.mxu0 0.0
    %609 = vmatpush.xpose.msra.mxu0 %v357
    %610 = vmatmul.f32.gmra.mxu0 %v373
    %v611 = vpop.f32.mrf.mxu0
    %v612 = vadd.f32 0.0, %v611
    %613 = vdwg.mxu0
    %vm614 = vcmask 64512
    %v616 = vsel %vm614, %v392, 0
    %618 = vmatpush.msra.mxu0 0.0
    %619 = vmatpush.msra.mxu0 0.0
    %620 = vmatpush.msra.mxu0 0.0
    %621 = vmatpush.msra.mxu0 0.0
    %622 = vmatpush.msra.mxu0 0.0
    %623 = vmatpush.msra.mxu0 0.0
    %624 = vmatpush.msra.mxu0 0.0
    %625 = vmatpush.msra.mxu0 0.0
    %626 = vmatpush.msra.mxu0 0.0
    %627 = vmatpush.msra.mxu0 0.0
    %628 = vmatpush.msra.mxu0 0.0
    %629 = vmatpush.msra.mxu0 0.0
    %630 = vmatpush.msra.mxu0 0.0
    %631 = vmatpush.msra.mxu0 0.0
    %632 = vmatpush.msra.mxu0 0.0
    %633 = vmatpush.msra.mxu0 %v346
    %634 = vmatmul.f32.gmra.mxu0 %v616
    %v635 = vpop.f32.mrf.mxu0
    %v636 = vadd.f32 0.0, %v635
    %637 = vdwg.mxu0
    %v639 = vsel %vm614, %v412, 0
    %641 = vmatpush.msra.mxu0 0.0
    %642 = vmatpush.msra.mxu0 0.0
    %643 = vmatpush.msra.mxu0 0.0
    %644 = vmatpush.msra.mxu0 0.0
    %645 = vmatpush.msra.mxu0 0.0
    %646 = vmatpush.msra.mxu0 0.0
    %647 = vmatpush.msra.mxu0 0.0
    %648 = vmatpush.msra.mxu0 0.0
    %649 = vmatpush.msra.mxu0 0.0
    %650 = vmatpush.msra.mxu0 0.0
    %651 = vmatpush.msra.mxu0 0.0
    %652 = vmatpush.msra.mxu0 0.0
    %653 = vmatpush.msra.mxu0 0.0
    %654 = vmatpush.msra.mxu0 0.0
    %655 = vmatpush.msra.mxu0 0.0
    %656 = vmatpush.msra.mxu0 %v347
    %657 = vmatmul.f32.gmra.mxu0 %v639
    %v658 = vpop.f32.mrf.mxu0
    %v659 = vadd.f32 0.0, %v658
    %660 = vdwg.mxu0
    %v662 = vsel %vm614, %v432, 0
    %664 = vmatpush.msra.mxu0 0.0
    %665 = vmatpush.msra.mxu0 0.0
    %666 = vmatpush.msra.mxu0 0.0
    %667 = vmatpush.msra.mxu0 0.0
    %668 = vmatpush.msra.mxu0 0.0
    %669 = vmatpush.msra.mxu0 0.0
    %670 = vmatpush.msra.mxu0 0.0
    %671 = vmatpush.msra.mxu0 0.0
    %672 = vmatpush.msra.mxu0 0.0
    %673 = vmatpush.msra.mxu0 0.0
    %674 = vmatpush.msra.mxu0 0.0
    %675 = vmatpush.msra.mxu0 0.0
    %676 = vmatpush.msra.mxu0 0.0
    %677 = vmatpush.msra.mxu0 0.0
    %678 = vmatpush.msra.mxu0 0.0
    %679 = vmatpush.msra.mxu0 %v348
    %680 = vmatmul.f32.gmra.mxu0 %v662
    %v681 = vpop.f32.mrf.mxu0
    %v682 = vadd.f32 0.0, %v681
    %683 = vdwg.mxu0
    %v685 = vsel %vm614, %v452, 0
    %687 = vmatpush.msra.mxu0 0.0
    %688 = vmatpush.msra.mxu0 0.0
    %689 = vmatpush.msra.mxu0 0.0
    %690 = vmatpush.msra.mxu0 0.0
    %691 = vmatpush.msra.mxu0 0.0
    %692 = vmatpush.msra.mxu0 0.0
    %693 = vmatpush.msra.mxu0 0.0
    %694 = vmatpush.msra.mxu0 0.0
    %695 = vmatpush.msra.mxu0 0.0
    %696 = vmatpush.msra.mxu0 0.0
    %697 = vmatpush.msra.mxu0 0.0
    %698 = vmatpush.msra.mxu0 0.0
    %699 = vmatpush.msra.mxu0 0.0
    %700 = vmatpush.msra.mxu0 0.0
    %701 = vmatpush.msra.mxu0 0.0
    %702 = vmatpush.msra.mxu0 %v349
    %703 = vmatmul.f32.gmra.mxu0 %v685
    %v704 = vpop.f32.mrf.mxu0
    %v705 = vadd.f32 0.0, %v704
    %706 = vdwg.mxu0
    %v708 = vsel %vm614, %v472, 0
    %710 = vmatpush.msra.mxu0 0.0
    %711 = vmatpush.msra.mxu0 0.0
    %712 = vmatpush.msra.mxu0 0.0
    %713 = vmatpush.msra.mxu0 0.0
    %714 = vmatpush.msra.mxu0 0.0
    %715 = vmatpush.msra.mxu0 0.0
    %716 = vmatpush.msra.mxu0 0.0
    %717 = vmatpush.msra.mxu0 0.0
    %718 = vmatpush.msra.mxu0 0.0
    %719 = vmatpush.msra.mxu0 0.0
    %720 = vmatpush.msra.mxu0 0.0
    %721 = vmatpush.msra.mxu0 0.0
    %722 = vmatpush.msra.mxu0 0.0
    %723 = vmatpush.msra.mxu0 0.0
    %724 = vmatpush.msra.mxu0 0.0
    %725 = vmatpush.msra.mxu0 %v350
    %726 = vmatmul.f32.gmra.mxu0 %v708
    %v727 = vpop.f32.mrf.mxu0
    %v728 = vadd.f32 0.0, %v727
    %729 = vdwg.mxu0
    %v731 = vsel %vm614, %v492, 0
    %733 = vmatpush.msra.mxu0 0.0
    %734 = vmatpush.msra.mxu0 0.0
    %735 = vmatpush.msra.mxu0 0.0
    %736 = vmatpush.msra.mxu0 0.0
    %737 = vmatpush.msra.mxu0 0.0
    %738 = vmatpush.msra.mxu0 0.0
    %739 = vmatpush.msra.mxu0 0.0
    %740 = vmatpush.msra.mxu0 0.0
    %741 = vmatpush.msra.mxu0 0.0
    %742 = vmatpush.msra.mxu0 0.0
    %743 = vmatpush.msra.mxu0 0.0
    %744 = vmatpush.msra.mxu0 0.0
    %745 = vmatpush.msra.mxu0 0.0
    %746 = vmatpush.msra.mxu0 0.0
    %747 = vmatpush.msra.mxu0 0.0
    %748 = vmatpush.msra.mxu0 %v351
    %749 = vmatmul.f32.gmra.mxu0 %v731
    %v750 = vpop.f32.mrf.mxu0
    %v751 = vadd.f32 0.0, %v750
    %752 = vdwg.mxu0
    %v754 = vsel %vm614, %v512, 0
    %756 = vmatpush.msra.mxu0 0.0
    %757 = vmatpush.msra.mxu0 0.0
    %758 = vmatpush.msra.mxu0 0.0
    %759 = vmatpush.msra.mxu0 0.0
    %760 = vmatpush.msra.mxu0 0.0
    %761 = vmatpush.msra.mxu0 0.0
    %762 = vmatpush.msra.mxu0 0.0
    %763 = vmatpush.msra.mxu0 0.0
    %764 = vmatpush.msra.mxu0 0.0
    %765 = vmatpush.msra.mxu0 0.0
    %766 = vmatpush.msra.mxu0 0.0
    %767 = vmatpush.msra.mxu0 0.0
    %768 = vmatpush.msra.mxu0 0.0
    %769 = vmatpush.msra.mxu0 0.0
    %770 = vmatpush.msra.mxu0 0.0
    %771 = vmatpush.msra.mxu0 %v352
    %772 = vmatmul.f32.gmra.mxu0 %v754
    %v773 = vpop.f32.mrf.mxu0
    %v774 = vadd.f32 0.0, %v773
    %775 = vdwg.mxu0
    %v777 = vsel %vm614, %v532, 0
    %779 = vmatpush.msra.mxu0 0.0
    %780 = vmatpush.msra.mxu0 0.0
    %781 = vmatpush.msra.mxu0 0.0
    %782 = vmatpush.msra.mxu0 0.0
    %783 = vmatpush.msra.mxu0 0.0
    %784 = vmatpush.msra.mxu0 0.0
    %785 = vmatpush.msra.mxu0 0.0
    %786 = vmatpush.msra.mxu0 0.0
    %787 = vmatpush.msra.mxu0 0.0
    %788 = vmatpush.msra.mxu0 0.0
    %789 = vmatpush.msra.mxu0 0.0
    %790 = vmatpush.msra.mxu0 0.0
    %791 = vmatpush.msra.mxu0 0.0
    %792 = vmatpush.msra.mxu0 0.0
    %793 = vmatpush.msra.mxu0 0.0
    %794 = vmatpush.msra.mxu0 %v353
    %795 = vmatmul.f32.gmra.mxu0 %v777
    %v796 = vpop.f32.mrf.mxu0
    %v797 = vadd.f32 0.0, %v796
    %798 = vdwg.mxu0
    %v800 = vsel %vm614, %v552, 0
    %802 = vmatpush.msra.mxu0 0.0
    %803 = vmatpush.msra.mxu0 0.0
    %804 = vmatpush.msra.mxu0 0.0
    %805 = vmatpush.msra.mxu0 0.0
    %806 = vmatpush.msra.mxu0 0.0
    %807 = vmatpush.msra.mxu0 0.0
    %808 = vmatpush.msra.mxu0 0.0
    %809 = vmatpush.msra.mxu0 0.0
    %810 = vmatpush.msra.mxu0 0.0
    %811 = vmatpush.msra.mxu0 0.0
    %812 = vmatpush.msra.mxu0 0.0
    %813 = vmatpush.msra.mxu0 0.0
    %814 = vmatpush.msra.mxu0 0.0
    %815 = vmatpush.msra.mxu0 0.0
    %816 = vmatpush.msra.mxu0 0.0
    %817 = vmatpush.msra.mxu0 %v354
    %818 = vmatmul.f32.gmra.mxu0 %v800
    %v819 = vpop.f32.mrf.mxu0
    %v820 = vadd.f32 0.0, %v819
    %821 = vdwg.mxu0
    %v823 = vsel %vm614, %v572, 0
    %825 = vmatpush.msra.mxu0 0.0
    %826 = vmatpush.msra.mxu0 0.0
    %827 = vmatpush.msra.mxu0 0.0
    %828 = vmatpush.msra.mxu0 0.0
    %829 = vmatpush.msra.mxu0 0.0
    %830 = vmatpush.msra.mxu0 0.0
    %831 = vmatpush.msra.mxu0 0.0
    %832 = vmatpush.msra.mxu0 0.0
    %833 = vmatpush.msra.mxu0 0.0
    %834 = vmatpush.msra.mxu0 0.0
    %835 = vmatpush.msra.mxu0 0.0
    %836 = vmatpush.msra.mxu0 0.0
    %837 = vmatpush.msra.mxu0 0.0
    %838 = vmatpush.msra.mxu0 0.0
    %839 = vmatpush.msra.mxu0 0.0
    %840 = vmatpush.msra.mxu0 %v355
    %841 = vmatmul.f32.gmra.mxu0 %v823
    %v842 = vpop.f32.mrf.mxu0
    %v843 = vadd.f32 0.0, %v842
    %844 = vdwg.mxu0
    %v846 = vsel %vm614, %v592, 0
    %848 = vmatpush.msra.mxu0 0.0
    %849 = vmatpush.msra.mxu0 0.0
    %850 = vmatpush.msra.mxu0 0.0
    %851 = vmatpush.msra.mxu0 0.0
    %852 = vmatpush.msra.mxu0 0.0
    %853 = vmatpush.msra.mxu0 0.0
    %854 = vmatpush.msra.mxu0 0.0
    %855 = vmatpush.msra.mxu0 0.0
    %856 = vmatpush.msra.mxu0 0.0
    %857 = vmatpush.msra.mxu0 0.0
    %858 = vmatpush.msra.mxu0 0.0
    %859 = vmatpush.msra.mxu0 0.0
    %860 = vmatpush.msra.mxu0 0.0
    %861 = vmatpush.msra.mxu0 0.0
    %862 = vmatpush.msra.mxu0 0.0
    %863 = vmatpush.msra.mxu0 %v356
    %864 = vmatmul.f32.gmra.mxu0 %v846
    %v865 = vpop.f32.mrf.mxu0
    %v866 = vadd.f32 0.0, %v865
    %867 = vdwg.mxu0
    %v869 = vsel %vm614, %v612, 0
    %871 = vmatpush.msra.mxu0 0.0
    %872 = vmatpush.msra.mxu0 0.0
    %873 = vmatpush.msra.mxu0 0.0
    %874 = vmatpush.msra.mxu0 0.0
    %875 = vmatpush.msra.mxu0 0.0
    %876 = vmatpush.msra.mxu0 0.0
    %877 = vmatpush.msra.mxu0 0.0
    %878 = vmatpush.msra.mxu0 0.0
    %879 = vmatpush.msra.mxu0 0.0
    %880 = vmatpush.msra.mxu0 0.0
    %881 = vmatpush.msra.mxu0 0.0
    %882 = vmatpush.msra.mxu0 0.0
    %883 = vmatpush.msra.mxu0 0.0
    %884 = vmatpush.msra.mxu0 0.0
    %885 = vmatpush.msra.mxu0 0.0
    %886 = vmatpush.msra.mxu0 %v357
    %887 = vmatmul.f32.gmra.mxu0 %v869
    %v888 = vpop.f32.mrf.mxu0
    %v889 = vadd.f32 0.0, %v888
    %890 = vdwg.mxu0
    %v891 = vmul.f32 %v237, %v636
    %v892 = vmul.f32 %v238, %v659
    %v893 = vmul.f32 %v239, %v682
    %v894 = vmul.f32 %v240, %v705
    %v895 = vmul.f32 %v241, %v728
    %v896 = vmul.f32 %v242, %v751
    %v897 = vmul.f32 %v243, %v774
    %v898 = vmul.f32 %v244, %v797
    %v899 = vmul.f32 %v245, %v820
    %v900 = vmul.f32 %v246, %v843
    %v901 = vmul.f32 %v247, %v866
    %v902 = vmul.f32 %v248, %v889
    %v903 = vrot.slane %v891, 4
    %v904 = vadd.f32 %v891, %v903
    %v905 = vrot.slane %v904, 2
    %v906 = vadd.f32 %v904, %v905
    %v907 = vrot.slane %v906, 1
    %v908 = vadd.f32 %v906, %v907
    %v909 = vrot.slane %v892, 4
    %v910 = vadd.f32 %v892, %v909
    %v911 = vrot.slane %v910, 2
    %v912 = vadd.f32 %v910, %v911
    %v913 = vrot.slane %v912, 1
    %v914 = vadd.f32 %v912, %v913
    %v915 = vrot.slane %v893, 4
    %v916 = vadd.f32 %v893, %v915
    %v917 = vrot.slane %v916, 2
    %v918 = vadd.f32 %v916, %v917
    %v919 = vrot.slane %v918, 1
    %v920 = vadd.f32 %v918, %v919
    %v921 = vrot.slane %v894, 4
    %v922 = vadd.f32 %v894, %v921
    %v923 = vrot.slane %v922, 2
    %v924 = vadd.f32 %v922, %v923
    %v925 = vrot.slane %v924, 1
    %v926 = vadd.f32 %v924, %v925
    %v927 = vrot.slane %v895, 4
    %v928 = vadd.f32 %v895, %v927
    %v929 = vrot.slane %v928, 2
    %v930 = vadd.f32 %v928, %v929
    %v931 = vrot.slane %v930, 1
    %v932 = vadd.f32 %v930, %v931
    %v933 = vrot.slane %v896, 4
    %v934 = vadd.f32 %v896, %v933
    %v935 = vrot.slane %v934, 2
    %v936 = vadd.f32 %v934, %v935
    %v937 = vrot.slane %v936, 1
    %v938 = vadd.f32 %v936, %v937
    %v939 = vrot.slane %v897, 4
    %v940 = vadd.f32 %v897, %v939
    %v941 = vrot.slane %v940, 2
    %v942 = vadd.f32 %v940, %v941
    %v943 = vrot.slane %v942, 1
    %v944 = vadd.f32 %v942, %v943
    %v945 = vrot.slane %v898, 4
    %v946 = vadd.f32 %v898, %v945
    %v947 = vrot.slane %v946, 2
    %v948 = vadd.f32 %v946, %v947
    %v949 = vrot.slane %v948, 1
    %v950 = vadd.f32 %v948, %v949
    %v951 = vrot.slane %v899, 4
    %v952 = vadd.f32 %v899, %v951
    %v953 = vrot.slane %v952, 2
    %v954 = vadd.f32 %v952, %v953
    %v955 = vrot.slane %v954, 1
    %v956 = vadd.f32 %v954, %v955
    %v957 = vrot.slane %v900, 4
    %v958 = vadd.f32 %v900, %v957
    %v959 = vrot.slane %v958, 2
    %v960 = vadd.f32 %v958, %v959
    %v961 = vrot.slane %v960, 1
    %v962 = vadd.f32 %v960, %v961
    %v963 = vrot.slane %v901, 4
    %v964 = vadd.f32 %v901, %v963
    %v965 = vrot.slane %v964, 2
    %v966 = vadd.f32 %v964, %v965
    %v967 = vrot.slane %v966, 1
    %v968 = vadd.f32 %v966, %v967
    %v969 = vrot.slane %v902, 4
    %v970 = vadd.f32 %v902, %v969
    %v971 = vrot.slane %v970, 2
    %v972 = vadd.f32 %v970, %v971
    %v973 = vrot.slane %v972, 1
    %v974 = vadd.f32 %v972, %v973
    %v975 = vrot.slane %v237, 4
    %v976 = vadd.f32 %v237, %v975
    %v977 = vrot.slane %v976, 2
    %v978 = vadd.f32 %v976, %v977
    %v979 = vrot.slane %v978, 1
    %v980 = vadd.f32 %v978, %v979
    %v981 = vrot.slane %v238, 4
    %v982 = vadd.f32 %v238, %v981
    %v983 = vrot.slane %v982, 2
    %v984 = vadd.f32 %v982, %v983
    %v985 = vrot.slane %v984, 1
    %v986 = vadd.f32 %v984, %v985
    %v987 = vrot.slane %v239, 4
    %v988 = vadd.f32 %v239, %v987
    %v989 = vrot.slane %v988, 2
    %v990 = vadd.f32 %v988, %v989
    %v991 = vrot.slane %v990, 1
    %v992 = vadd.f32 %v990, %v991
    %v993 = vrot.slane %v240, 4
    %v994 = vadd.f32 %v240, %v993
    %v995 = vrot.slane %v994, 2
    %v996 = vadd.f32 %v994, %v995
    %v997 = vrot.slane %v996, 1
    %v998 = vadd.f32 %v996, %v997
    %v999 = vrot.slane %v241, 4
    %v1000 = vadd.f32 %v241, %v999
    %v1001 = vrot.slane %v1000, 2
    %v1002 = vadd.f32 %v1000, %v1001
    %v1003 = vrot.slane %v1002, 1
    %v1004 = vadd.f32 %v1002, %v1003
    %v1005 = vrot.slane %v242, 4
    %v1006 = vadd.f32 %v242, %v1005
    %v1007 = vrot.slane %v1006, 2
    %v1008 = vadd.f32 %v1006, %v1007
    %v1009 = vrot.slane %v1008, 1
    %v1010 = vadd.f32 %v1008, %v1009
    %v1011 = vrot.slane %v243, 4
    %v1012 = vadd.f32 %v243, %v1011
    %v1013 = vrot.slane %v1012, 2
    %v1014 = vadd.f32 %v1012, %v1013
    %v1015 = vrot.slane %v1014, 1
    %v1016 = vadd.f32 %v1014, %v1015
    %v1017 = vrot.slane %v244, 4
    %v1018 = vadd.f32 %v244, %v1017
    %v1019 = vrot.slane %v1018, 2
    %v1020 = vadd.f32 %v1018, %v1019
    %v1021 = vrot.slane %v1020, 1
    %v1022 = vadd.f32 %v1020, %v1021
    %v1023 = vrot.slane %v245, 4
    %v1024 = vadd.f32 %v245, %v1023
    %v1025 = vrot.slane %v1024, 2
    %v1026 = vadd.f32 %v1024, %v1025
    %v1027 = vrot.slane %v1026, 1
    %v1028 = vadd.f32 %v1026, %v1027
    %v1029 = vrot.slane %v246, 4
    %v1030 = vadd.f32 %v246, %v1029
    %v1031 = vrot.slane %v1030, 2
    %v1032 = vadd.f32 %v1030, %v1031
    %v1033 = vrot.slane %v1032, 1
    %v1034 = vadd.f32 %v1032, %v1033
    %v1035 = vrot.slane %v247, 4
    %v1036 = vadd.f32 %v247, %v1035
    %v1037 = vrot.slane %v1036, 2
    %v1038 = vadd.f32 %v1036, %v1037
    %v1039 = vrot.slane %v1038, 1
    %v1040 = vadd.f32 %v1038, %v1039
    %v1041 = vrot.slane %v248, 4
    %v1042 = vadd.f32 %v248, %v1041
    %v1043 = vrot.slane %v1042, 2
    %v1044 = vadd.f32 %v1042, %v1043
    %v1045 = vrot.slane %v1044, 1
    %v1046 = vadd.f32 %v1044, %v1045
    %v1047 = vrot.slane %v346, 4
    %v1048 = vadd.f32 %v346, %v1047
    %v1049 = vrot.slane %v1048, 2
    %v1050 = vadd.f32 %v1048, %v1049
    %v1051 = vrot.slane %v1050, 1
    %v1052 = vadd.f32 %v1050, %v1051
    %v1053 = vrot.slane %v347, 4
    %v1054 = vadd.f32 %v347, %v1053
    %v1055 = vrot.slane %v1054, 2
    %v1056 = vadd.f32 %v1054, %v1055
    %v1057 = vrot.slane %v1056, 1
    %v1058 = vadd.f32 %v1056, %v1057
    %v1059 = vrot.slane %v348, 4
    %v1060 = vadd.f32 %v348, %v1059
    %v1061 = vrot.slane %v1060, 2
    %v1062 = vadd.f32 %v1060, %v1061
    %v1063 = vrot.slane %v1062, 1
    %v1064 = vadd.f32 %v1062, %v1063
    %v1065 = vrot.slane %v349, 4
    %v1066 = vadd.f32 %v349, %v1065
    %v1067 = vrot.slane %v1066, 2
    %v1068 = vadd.f32 %v1066, %v1067
    %v1069 = vrot.slane %v1068, 1
    %v1070 = vadd.f32 %v1068, %v1069
    %v1071 = vrot.slane %v350, 4
    %v1072 = vadd.f32 %v350, %v1071
    %v1073 = vrot.slane %v1072, 2
    %v1074 = vadd.f32 %v1072, %v1073
    %v1075 = vrot.slane %v1074, 1
    %v1076 = vadd.f32 %v1074, %v1075
    %v1077 = vrot.slane %v351, 4
    %v1078 = vadd.f32 %v351, %v1077
    %v1079 = vrot.slane %v1078, 2
    %v1080 = vadd.f32 %v1078, %v1079
    %v1081 = vrot.slane %v1080, 1
    %v1082 = vadd.f32 %v1080, %v1081
    %v1083 = vrot.slane %v352, 4
    %v1084 = vadd.f32 %v352, %v1083
    %v1085 = vrot.slane %v1084, 2
    %v1086 = vadd.f32 %v1084, %v1085
    %v1087 = vrot.slane %v1086, 1
    %v1088 = vadd.f32 %v1086, %v1087
    %v1089 = vrot.slane %v353, 4
    %v1090 = vadd.f32 %v353, %v1089
    %v1091 = vrot.slane %v1090, 2
    %v1092 = vadd.f32 %v1090, %v1091
    %v1093 = vrot.slane %v1092, 1
    %v1094 = vadd.f32 %v1092, %v1093
    %v1095 = vrot.slane %v354, 4
    %v1096 = vadd.f32 %v354, %v1095
    %v1097 = vrot.slane %v1096, 2
    %v1098 = vadd.f32 %v1096, %v1097
    %v1099 = vrot.slane %v1098, 1
    %v1100 = vadd.f32 %v1098, %v1099
    %v1101 = vrot.slane %v355, 4
    %v1102 = vadd.f32 %v355, %v1101
    %v1103 = vrot.slane %v1102, 2
    %v1104 = vadd.f32 %v1102, %v1103
    %v1105 = vrot.slane %v1104, 1
    %v1106 = vadd.f32 %v1104, %v1105
    %v1107 = vrot.slane %v356, 4
    %v1108 = vadd.f32 %v356, %v1107
    %v1109 = vrot.slane %v1108, 2
    %v1110 = vadd.f32 %v1108, %v1109
    %v1111 = vrot.slane %v1110, 1
    %v1112 = vadd.f32 %v1110, %v1111
    %v1113 = vrot.slane %v357, 4
    %v1114 = vadd.f32 %v357, %v1113
    %v1115 = vrot.slane %v1114, 2
    %v1116 = vadd.f32 %v1114, %v1115
    %v1117 = vrot.slane %v1116, 1
    %v1118 = vadd.f32 %v1116, %v1117
    %s1119 = sld [smem:[#allocation2]]
    %v1120 = vstv %s1119
    %v1121 = vmul.f32 %v1120, %v980
    %v1122 = vmul.f32 %v1120, %v986
    %v1123 = vmul.f32 %v1120, %v992
    %v1124 = vmul.f32 %v1120, %v998
    %v1125 = vmul.f32 %v1120, %v1004
    %v1126 = vmul.f32 %v1120, %v1010
    %v1127 = vmul.f32 %v1120, %v1016
    %v1128 = vmul.f32 %v1120, %v1022
    %v1129 = vmul.f32 %v1120, %v1028
    %v1130 = vmul.f32 %v1120, %v1034
    %v1131 = vmul.f32 %v1120, %v1040
    %v1132 = vmul.f32 %v1120, %v1046
    %v1133 = vmul.f32 %v1121, %v1052
    %v1134 = vmul.f32 %v1122, %v1058
    %v1135 = vmul.f32 %v1123, %v1064
    %v1136 = vmul.f32 %v1124, %v1070
    %v1137 = vmul.f32 %v1125, %v1076
    %v1138 = vmul.f32 %v1126, %v1082
    %v1139 = vmul.f32 %v1127, %v1088
    %v1140 = vmul.f32 %v1128, %v1094
    %v1141 = vmul.f32 %v1129, %v1100
    %v1142 = vmul.f32 %v1130, %v1106
    %v1143 = vmul.f32 %v1131, %v1112
    %v1144 = vmul.f32 %v1132, %v1118
    %v1145 = vadd.f32 %v908, %v1133
    %v1146 = vadd.f32 %v914, %v1134
    %v1147 = vadd.f32 %v920, %v1135
    %v1148 = vadd.f32 %v926, %v1136
    %v1149 = vadd.f32 %v932, %v1137
    %v1150 = vadd.f32 %v938, %v1138
    %v1151 = vadd.f32 %v944, %v1139
    %v1152 = vadd.f32 %v950, %v1140
    %v1153 = vadd.f32 %v956, %v1141
    %v1154 = vadd.f32 %v962, %v1142
    %v1155 = vadd.f32 %v968, %v1143
    %v1156 = vadd.f32 %v974, %v1144
    %v1157 = vld [vmem:[#allocation11] sm:$0xff]
    %v1158 = vld [vmem:[#allocation11 + $0x8] sm:$0xff]
    %v1159 = vld [vmem:[#allocation11 + $0x10] sm:$0xff]
    %v1160 = vld [vmem:[#allocation11 + $0x18] sm:$0xff]
    %v1161 = vld [vmem:[#allocation11 + $0x20] sm:$0xff]
    %v1162 = vld [vmem:[#allocation11 + $0x28] sm:$0xff]
    %v1163 = vld [vmem:[#allocation11 + $0x30] sm:$0xff]
    %v1164 = vld [vmem:[#allocation11 + $0x38] sm:$0xff]
    %v1165 = vld [vmem:[#allocation11 + $0x40] sm:$0xff]
    %v1166 = vld [vmem:[#allocation11 + $0x48] sm:$0xff]
    %v1167 = vld [vmem:[#allocation11 + $0x50] sm:$0xff]
    %v1168 = vld [vmem:[#allocation11 + $0x58] sm:$0xff]
    %v1169 = vld [vmem:[#allocation11 + $0x60] sm:$0xff]
    %v1170 = vld [vmem:[#allocation11 + $0x68] sm:$0xff]
    %v1171 = vld [vmem:[#allocation11 + $0x70] sm:$0xff]
    %v1172 = vld [vmem:[#allocation11 + $0x78] sm:$0xff]
    %v1173 = vld [vmem:[%s9] sm:$0x1]
    %v1175 = vperm.slane %v1173, 0
    %vm1189 = vcmask 1041409
    %v1190 = vsel %vm1189, %v1146, %v1145
    %vm1191 = vcmask 1042434
    %v1192 = vsel %vm1191, %v1147, %v1190
    %vm1193 = vcmask 1043459
    %v1194 = vsel %vm1193, %v1148, %v1192
    %vm1195 = vcmask 1044484
    %v1196 = vsel %vm1195, %v1149, %v1194
    %vm1197 = vcmask 1045509
    %v1198 = vsel %vm1197, %v1150, %v1196
    %vm1199 = vcmask 1046534
    %v1200 = vsel %vm1199, %v1151, %v1198
    %vm1201 = vcmask 1047559
    %v1202 = vsel %vm1201, %v1152, %v1200
    %v1203 = vsel %vm1189, %v1154, %v1153
    %v1204 = vsel %vm1191, %v1155, %v1203
    %v1205 = vsel %vm1193, %v1156, %v1204
    %1208 = vmatpush.msra.mxu0 %v1172
    %1209 = vmatpush.msra.mxu0 %v1171
    %1210 = vmatpush.msra.mxu0 %v1170
    %1211 = vmatpush.msra.mxu0 %v1169
    %1212 = vmatpush.msra.mxu0 %v1168
    %1213 = vmatpush.msra.mxu0 %v1167
    %1214 = vmatpush.msra.mxu0 %v1166
    %1215 = vmatpush.msra.mxu0 %v1165
    %1216 = vmatpush.msra.mxu0 %v1164
    %1217 = vmatpush.msra.mxu0 %v1163
    %1218 = vmatpush.msra.mxu0 %v1162
    %1219 = vmatpush.msra.mxu0 %v1161
    %1220 = vmatpush.msra.mxu0 %v1160
    %1221 = vmatpush.msra.mxu0 %v1159
    %1222 = vmatpush.msra.mxu0 %v1158
    %1223 = vmatpush.msra.mxu0 %v1157
    %1224 = vmatmul.f32.gmra.mxu0 %v1202
    %v1225 = vpop.f32.mrf.mxu0
    %v1226 = vadd.f32 %v1175, %v1225
    %1227 = vmatmul.f32.gmra.mxu0 %v1205
    %v1228 = vpop.f32.mrf.mxu0
    %v1229 = vadd.f32 %v1175, %v1228
    %1230 = vdwg.mxu0
    %1231 = vst [vmem:[#allocation12] sm:$0xff] %v1226
    %1232 = vst [vmem:[#allocation12 + $0x8] sm:$0xf] %v1229
    // Predicated region
    $region62: #{tpu_custom_call.1} parent=1 // pred_check
      _
    $region63: #{tpu_custom_call.1} parent=1 // pred_check_branch
      %1234 = sbr.rel (0) target = $region65
    $region64: #{tpu_custom_call.1} parent=1 // pred_region
      %1236 = vsyncadd [#allocation5], 0
      %s1237 = sshll.u32 [#allocation12], 4
      %s1238 = int_to_ptr.vmem [resolvable:$true] %s1237
      %s1239 = sshll.u32 %s10, 4
      %s1240 = int_to_ptr.hbm [resolvable:$true] %s1239
      %1245 = dma.vmem_to_hbm [thread:$0]  %s1238, 256, %s1240, [#allocation5], 128, 128, 8
    $region65: #{tpu_custom_call.1} parent=1 // pred_fallthru
      _
    // Predicated region
    $region66: #{tpu_custom_call.1} parent=1 // pred_check
      _
    $region67: #{tpu_custom_call.1} parent=1 // pred_check_branch
      %1247 = sbr.rel (0) target = $region69
    $region68: #{tpu_custom_call.1} parent=1 // pred_region
      %1249 = dma.done [#allocation5], 256
    $region69: #{tpu_custom_call.1} parent=1 // pred_fallthru
      _
    %1250 = vsyncpa [#allocation4], 1
    %1251 = vsyncpa [#allocation7], 1
    %1252 = vsyncpa [#allocation10], 1
    %1253 = vsyncpa [#allocation5], 1

</llo_original>
